<compile_context>
chip_gen: v7x
topology: tpu7x:2x2x1
jax: 0.10.0
libtpu: 0.0.40
codegen_flags: <defaults>
</compile_context>

<pallas_src>
import functools
import math

import jax
import jax.numpy as jnp
from jax.experimental import pallas as pl
from jax.experimental.pallas import tpu as pltpu

EPS = 1e-5  # PyTorch BatchNorm1d default eps


def _round_up(n, m):
    return ((n + m - 1) // m) * m


def _mlp_kernel(num_hidden_layers, identity_residual, compute_dtype, x_ref, *refs):
    """One batch tile of the full ImprovedMLP eval-mode forward.

    refs (all params resident across grid steps, constant index_map):
      [wres, bres]?    residual Linear (omitted when input_size == hidden_size)
      w0               first hidden Linear weight  [Din, H]       (compute dtype)
      wh?              remaining hidden weights    [L-1, H, H]    (omitted if L == 1)
      scale, shift     folded BN(+bias) affine     [L, 1, H] float32
      wout, bout       lane-padded output Linear   [H, Dp], [1, Dp]
      o_ref            output block                [tile_b, Dp]
    """
    it = iter(refs)
    if not identity_residual:
        wres_ref = next(it)
        bres_ref = next(it)
    w0_ref = next(it)
    wh_ref = next(it) if num_hidden_layers > 1 else None
    scale_ref = next(it)
    shift_ref = next(it)
    wout_ref = next(it)
    bout_ref = next(it)
    o_ref = next(it)

    # In-kernel cast (VPU, hidden under slack) instead of a separate XLA pass over x.
    x = x_ref[...].astype(compute_dtype)

    # residual = self.residual(x): nn.Identity() -> skip the matmul entirely.
    if identity_residual:
        residual = x.astype(jnp.float32)
    else:
        residual = (jnp.dot(x, wres_ref[...], preferred_element_type=jnp.float32)
                    + bres_ref[...])

    h = x
    for l in range(num_hidden_layers):                   # static unroll, small L
        w = w0_ref[...] if l == 0 else wh_ref[l - 1]     # static index -> [*, H]
        z = jnp.dot(h, w, preferred_element_type=jnp.float32)
        # Linear bias + BatchNorm(running stats) folded into a single FMA:
        #   BN(z + b + residual) == (z + residual) * scale + shift
        z = (z + residual) * scale_ref[l] + shift_ref[l]   # static ref reads, [1, H]
        hf = jnp.maximum(z, 0.0)                         # ReLU; Dropout is identity in eval
        residual = hf                                    # keep f32 residual
        h = hf.astype(compute_dtype)                     # no-op when compute dtype is f32

    o_ref[...] = (jnp.dot(h, wout_ref[...], preferred_element_type=jnp.float32)
                  + bout_ref[...]).astype(o_ref.dtype)


def improved_mlp_pallas(x, params, *, num_hidden_layers, num_batch_tiles=None,
                        compute_dtype=jnp.float32, out_dtype=None):
    """Eval-mode ImprovedMLP forward. x: [B, Din] -> [B, Dout]."""
    (wres, bres, w0, b0, wh, bh, gamma, beta, mean, var, wout, bout) = params
    B, Din = x.shape
    H = w0.shape[1]
    Dout = wout.shape[1]
    L = num_hidden_layers
    cd = compute_dtype
    odt = out_dtype if out_dtype is not None else x.dtype

    # ---- parameter preprocessing (tiny, runs once / fuses under jit) -------
    biases = [b0.reshape(1, H)]
    if L > 1:
        biases.append(bh.reshape(L - 1, H))
    b_all = jnp.concatenate(biases, axis=0)                      # [L, H]
    scale = gamma * jax.lax.rsqrt(var + EPS)                     # [L, H]
    shift = beta - mean * scale + b_all * scale                  # [L, H]
    scale = scale.reshape(L, 1, H).astype(jnp.float32)
    shift = shift.reshape(L, 1, H).astype(jnp.float32)

    # Lane-dense output: pad Dout to a multiple of 128 so stores are full-lane vst.
    Dout_pad = _round_up(max(Dout, 128), 128)
    wout_p = jnp.zeros((H, Dout_pad), jnp.float32).at[:, :Dout].set(wout)
    bout_p = jnp.zeros((1, Dout_pad), jnp.float32).at[:, :Dout].set(
        bout.reshape(1, Dout))

    # nn.Identity() residual iff input_size == hidden_size (mirrors the module ctor).
    identity_residual = (Din == H)

    param_arrays = []
    if not identity_residual:
        param_arrays += [wres.astype(cd), bres.reshape(1, H).astype(jnp.float32)]
    param_arrays += [w0.astype(cd)]
    if L > 1:                                  # avoid zero-sized operands when L == 1
        param_arrays += [wh.astype(cd)]
    param_arrays += [scale, shift, wout_p.astype(cd), bout_p]

    # ---- batch tiling -------------------------------------------------------
    # Default: a single grid step (whole batch) -- strictly best on v5e/v6e's single
    # TensorCore since the grid is a sequential loop with ~0.35us/step overhead.
    # Two "parallel" steps once B >= 512 so both v7x TensorCores get work.
    if num_batch_tiles is None:
        num_batch_tiles = 2 if B >= 512 else 1
    num_batch_tiles = max(1, min(num_batch_tiles, B))
    tile_b = -(-B // num_batch_tiles)              # ceil
    if num_batch_tiles > 1:
        tile_b = _round_up(tile_b, 8)              # (8,128) sublane constraint
    B_pad = tile_b * num_batch_tiles
    x_in = x if B_pad == B else jnp.pad(x, ((0, B_pad - B), (0, 0)))
    grid = (num_batch_tiles,)

    # ---- VMEM budget: 2x actual need, small floor, capped below physical ----
    in_bytes = tile_b * Din * x_in.dtype.itemsize
    out_bytes = tile_b * Dout_pad * jnp.dtype(odt).itemsize
    param_bytes = sum(a.size * a.dtype.itemsize for a in param_arrays)
    needed = 2 * (in_bytes + out_bytes) + 2 * param_bytes   # double-buffered blocks
    try:
        vmem_cap = int(pltpu.get_tpu_info().vmem_capacity_bytes)
    except Exception:
        vmem_cap = 64 * 1024 * 1024                          # v7x worst case
    vmem_limit = int(min(vmem_cap * 7 // 8, max(2 * needed, 4 * 1024 * 1024)))

    def full_spec(a):
        return pl.BlockSpec(a.shape, lambda i, nd=a.ndim: (0,) * nd)

    kernel = functools.partial(_mlp_kernel, L, identity_residual, cd)
    out_padded = pl.pallas_call(
        kernel,
        out_shape=jax.ShapeDtypeStruct((B_pad, Dout_pad), odt),
        grid_spec=pltpu.PrefetchScalarGridSpec(
            num_scalar_prefetch=0,
            grid=grid,
            in_specs=[pl.BlockSpec((tile_b, Din), lambda i: (i, 0))]
                     + [full_spec(a) for a in param_arrays],
            out_specs=pl.BlockSpec((tile_b, Dout_pad), lambda i: (i, 0)),
        ),
        compiler_params=pltpu.CompilerParams(
            dimension_semantics=("parallel",),
            vmem_limit_bytes=vmem_limit,
        ),
    )(x_in, *param_arrays)

    return out_padded[:B, :Dout]


def improved_mlp_ref(x, params, num_hidden_layers, compute_dtype=jnp.float32):
    """Pure-JAX reference matching the PyTorch eval-mode forward."""
    wres, bres, w0, b0, wh, bh, gamma, beta, mean, var, wout, bout = params
    cd = compute_dtype

    def mm(a, w):
        return jnp.dot(a.astype(cd), w.astype(cd), preferred_element_type=jnp.float32)

    residual = mm(x, wres) + bres
    h = x
    for l in range(num_hidden_layers):
        w = w0 if l == 0 else wh[l - 1]
        b = b0 if l == 0 else bh[l - 1]
        z = mm(h, w) + b + residual
        z = (z - mean[l]) * jax.lax.rsqrt(var[l] + EPS) * gamma[l] + beta[l]
        h = jnp.maximum(z, 0.0)
        residual = h
    return mm(h, wout) + bout


def init_params(key, input_size, hidden_size, output_size, num_hidden_layers):
    """Deterministic init following the module's __init__ shapes (PyTorch-style)."""
    def linear(k, fan_in, fan_out):
        bound = 1.0 / math.sqrt(fan_in)
        kw, kb = jax.random.split(k)
        w = jax.random.uniform(kw, (fan_in, fan_out), jnp.float32, -bound, bound)
        b = jax.random.uniform(kb, (1, fan_out), jnp.float32, -bound, bound)
        return w, b

    k0, k1, k2, k3 = jax.random.split(key, 4)
    w0, b0 = linear(k0, input_size, hidden_size)

    whs, bhs = [], []
    for l in range(num_hidden_layers - 1):
        w, b = linear(jax.random.fold_in(k1, l), hidden_size, hidden_size)
        whs.append(w)
        bhs.append(b)
    if whs:
        wh = jnp.stack(whs)          # [L-1, H, H]
        bh = jnp.stack(bhs)          # [L-1, 1, H]
    else:
        wh = jnp.zeros((0, hidden_size, hidden_size), jnp.float32)
        bh = jnp.zeros((0, 1, hidden_size), jnp.float32)

    wout, bout = linear(k2, hidden_size, output_size)

    if input_size == hidden_size:
        wres = jnp.eye(hidden_size, dtype=jnp.float32)
        bres = jnp.zeros((1, hidden_size), jnp.float32)
    else:
        wres, bres = linear(k3, input_size, hidden_size)

    # BatchNorm1d default init: gamma=1, beta=0, running_mean=0, running_var=1
    L = num_hidden_layers
    gamma = jnp.ones((L, hidden_size), jnp.float32)
    beta = jnp.zeros((L, hidden_size), jnp.float32)
    mean = jnp.zeros((L, hidden_size), jnp.float32)
    var = jnp.ones((L, hidden_size), jnp.float32)

    return (wres, bres, w0, b0, wh, bh, gamma, beta, mean, var, wout, bout)


if __name__ == "__main__":
    INPUT_SIZE, HIDDEN_SIZE, OUTPUT_SIZE, NUM_HIDDEN_LAYERS = 16, 32, 4, 3
    BATCH = 512  # >=512 -> two 256-row "parallel" tiles (feeds both v7x TCs)

    key = jax.random.PRNGKey(0)
    kx, kp = jax.random.split(key)
    x = jax.random.normal(kx, (BATCH, INPUT_SIZE), jnp.float32)
    params = init_params(kp, INPUT_SIZE, HIDDEN_SIZE, OUTPUT_SIZE, NUM_HIDDEN_LAYERS)

    fwd = jax.jit(functools.partial(improved_mlp_pallas,
                                    num_hidden_layers=NUM_HIDDEN_LAYERS))
    out = jax.block_until_ready(fwd(x, params))
    assert out.shape == (BATCH, OUTPUT_SIZE)

    # f32 compute path -> tight match against the f32 reference.
    ref_f32 = improved_mlp_ref(x, params, NUM_HIDDEN_LAYERS, compute_dtype=jnp.float32)
    assert jnp.allclose(out, ref_f32, atol=2e-3, rtol=2e-3), "mismatch vs f32 reference"

    # Also exercise the single-tile (v5e/v6e-style) path and the bf16 compute option.
    out_1tile = jax.block_until_ready(
        improved_mlp_pallas(x, params, num_hidden_layers=NUM_HIDDEN_LAYERS,
                            num_batch_tiles=1))
    assert jnp.allclose(out_1tile, ref_f32, atol=2e-3, rtol=2e-3), "1-tile mismatch"

    out_bf16 = jax.block_until_ready(
        improved_mlp_pallas(x, params, num_hidden_layers=NUM_HIDDEN_LAYERS,
                            compute_dtype=jnp.bfloat16))
    assert jnp.allclose(out_bf16, ref_f32, atol=5e-2, rtol=5e-2), "bf16 mismatch"

    print("KERNEL_OK")
</pallas_src>

<mosaic_0001>
module attributes {stable_mosaic.version = 11 : i64} {
  func.func @_mlp_kernel(%arg0: i32, %arg1: memref<256x16xf32, #tpu.memory_space<vmem>>, %arg2: memref<16x32xf32, #tpu.memory_space<vmem>>, %arg3: memref<1x32xf32, #tpu.memory_space<vmem>>, %arg4: memref<16x32xf32, #tpu.memory_space<vmem>>, %arg5: memref<2x32x32xf32, #tpu.memory_space<vmem>>, %arg6: memref<3x1x32xf32, #tpu.memory_space<vmem>>, %arg7: memref<3x1x32xf32, #tpu.memory_space<vmem>>, %arg8: memref<32x128xf32, #tpu.memory_space<vmem>>, %arg9: memref<1x128xf32, #tpu.memory_space<vmem>>, %arg10: memref<256x128xf32, #tpu.memory_space<vmem>>) attributes {dimension_semantics = [#tpu.dimension_semantics<parallel>], iteration_bounds = array<i64: 2>, scalar_prefetch = 0 : i64, scratch_operands = 0 : i64, tpu.core_type = #tpu.core_type<tc>, window_params = [{transform_indices = @transform_0, window_bounds = array<i64: 256, 16>}, {pipeline_mode = #tpu.pipeline_mode<synchronous>, transform_indices = @transform_1, window_bounds = array<i64: 16, 32>}, {pipeline_mode = #tpu.pipeline_mode<synchronous>, transform_indices = @transform_2, window_bounds = array<i64: 1, 32>}, {pipeline_mode = #tpu.pipeline_mode<synchronous>, transform_indices = @transform_3, window_bounds = array<i64: 16, 32>}, {pipeline_mode = #tpu.pipeline_mode<synchronous>, transform_indices = @transform_4, window_bounds = array<i64: 2, 32, 32>}, {pipeline_mode = #tpu.pipeline_mode<synchronous>, transform_indices = @transform_5, window_bounds = array<i64: 3, 1, 32>}, {pipeline_mode = #tpu.pipeline_mode<synchronous>, transform_indices = @transform_6, window_bounds = array<i64: 3, 1, 32>}, {pipeline_mode = #tpu.pipeline_mode<synchronous>, transform_indices = @transform_7, window_bounds = array<i64: 32, 128>}, {pipeline_mode = #tpu.pipeline_mode<synchronous>, transform_indices = @transform_8, window_bounds = array<i64: 1, 128>}, {transform_indices = @transform_9, window_bounds = array<i64: 256, 128>}]} {
    %c0 = arith.constant 0 : index
    %c0_0 = arith.constant 0 : index
    %0 = vector.load %arg1[%c0, %c0_0] : memref<256x16xf32, #tpu.memory_space<vmem>>, vector<256x16xf32>
    %c0_1 = arith.constant 0 : index
    %c0_2 = arith.constant 0 : index
    %1 = vector.load %arg2[%c0_1, %c0_2] : memref<16x32xf32, #tpu.memory_space<vmem>>, vector<16x32xf32>
    %cst = arith.constant dense<0.000000e+00> : vector<256x32xf32>
    %2 = tpu.matmul %0, %1, %cst {dimension_numbers = #tpu.dot_dimension_numbers<[1], [0], [0], [1], [0, 0, 1, 1], [], []>} : vector<256x16xf32>, vector<16x32xf32>, vector<256x32xf32> -> vector<256x32xf32>
    %c0_3 = arith.constant 0 : index
    %c0_4 = arith.constant 0 : index
    %3 = vector.load %arg3[%c0_3, %c0_4] : memref<1x32xf32, #tpu.memory_space<vmem>>, vector<1x32xf32>
    %4 = vector.broadcast %3 : vector<1x32xf32> to vector<256x32xf32>
    %5 = arith.addf %2, %4 : vector<256x32xf32>
    %c0_5 = arith.constant 0 : index
    %c0_6 = arith.constant 0 : index
    %6 = vector.load %arg4[%c0_5, %c0_6] : memref<16x32xf32, #tpu.memory_space<vmem>>, vector<16x32xf32>
    %cst_7 = arith.constant dense<0.000000e+00> : vector<256x32xf32>
    %7 = tpu.matmul %0, %6, %cst_7 {dimension_numbers = #tpu.dot_dimension_numbers<[1], [0], [0], [1], [0, 0, 1, 1], [], []>} : vector<256x16xf32>, vector<16x32xf32>, vector<256x32xf32> -> vector<256x32xf32>
    %8 = arith.addf %7, %5 : vector<256x32xf32>
    %c0_8 = arith.constant 0 : index
    %c0_9 = arith.constant 0 : index
    %c0_10 = arith.constant 0 : index
    %9 = vector.load %arg6[%c0_8, %c0_9, %c0_10] : memref<3x1x32xf32, #tpu.memory_space<vmem>>, vector<1x1x32xf32>
    %10 = vector.shape_cast %9 : vector<1x1x32xf32> to vector<1x32xf32>
    %11 = vector.broadcast %10 : vector<1x32xf32> to vector<256x32xf32>
    %12 = arith.mulf %8, %11 : vector<256x32xf32>
    %c0_11 = arith.constant 0 : index
    %c0_12 = arith.constant 0 : index
    %c0_13 = arith.constant 0 : index
    %13 = vector.load %arg7[%c0_11, %c0_12, %c0_13] : memref<3x1x32xf32, #tpu.memory_space<vmem>>, vector<1x1x32xf32>
    %14 = vector.shape_cast %13 : vector<1x1x32xf32> to vector<1x32xf32>
    %15 = vector.broadcast %14 : vector<1x32xf32> to vector<256x32xf32>
    %16 = arith.addf %12, %15 : vector<256x32xf32>
    %cst_14 = arith.constant 0.000000e+00 : f32
    %17 = vector.broadcast %cst_14 : f32 to vector<256x32xf32>
    %18 = arith.maximumf %16, %17 : vector<256x32xf32>
    %c0_15 = arith.constant 0 : index
    %c0_16 = arith.constant 0 : index
    %c0_17 = arith.constant 0 : index
    %19 = vector.load %arg5[%c0_15, %c0_16, %c0_17] : memref<2x32x32xf32, #tpu.memory_space<vmem>>, vector<1x32x32xf32>
    %20 = vector.shape_cast %19 : vector<1x32x32xf32> to vector<32x32xf32>
    %cst_18 = arith.constant dense<0.000000e+00> : vector<256x32xf32>
    %21 = tpu.matmul %18, %20, %cst_18 {dimension_numbers = #tpu.dot_dimension_numbers<[1], [0], [0], [1], [0, 0, 1, 1], [], []>} : vector<256x32xf32>, vector<32x32xf32>, vector<256x32xf32> -> vector<256x32xf32>
    %22 = arith.addf %21, %18 : vector<256x32xf32>
    %c1 = arith.constant 1 : index
    %c0_19 = arith.constant 0 : index
    %c0_20 = arith.constant 0 : index
    %23 = vector.load %arg6[%c1, %c0_19, %c0_20] : memref<3x1x32xf32, #tpu.memory_space<vmem>>, vector<1x1x32xf32>
    %24 = vector.shape_cast %23 : vector<1x1x32xf32> to vector<1x32xf32>
    %25 = vector.broadcast %24 : vector<1x32xf32> to vector<256x32xf32>
    %26 = arith.mulf %22, %25 : vector<256x32xf32>
    %c1_21 = arith.constant 1 : index
    %c0_22 = arith.constant 0 : index
    %c0_23 = arith.constant 0 : index
    %27 = vector.load %arg7[%c1_21, %c0_22, %c0_23] : memref<3x1x32xf32, #tpu.memory_space<vmem>>, vector<1x1x32xf32>
    %28 = vector.shape_cast %27 : vector<1x1x32xf32> to vector<1x32xf32>
    %29 = vector.broadcast %28 : vector<1x32xf32> to vector<256x32xf32>
    %30 = arith.addf %26, %29 : vector<256x32xf32>
    %cst_24 = arith.constant 0.000000e+00 : f32
    %31 = vector.broadcast %cst_24 : f32 to vector<256x32xf32>
    %32 = arith.maximumf %30, %31 : vector<256x32xf32>
    %c1_25 = arith.constant 1 : index
    %c0_26 = arith.constant 0 : index
    %c0_27 = arith.constant 0 : index
    %33 = vector.load %arg5[%c1_25, %c0_26, %c0_27] : memref<2x32x32xf32, #tpu.memory_space<vmem>>, vector<1x32x32xf32>
    %34 = vector.shape_cast %33 : vector<1x32x32xf32> to vector<32x32xf32>
    %cst_28 = arith.constant dense<0.000000e+00> : vector<256x32xf32>
    %35 = tpu.matmul %32, %34, %cst_28 {dimension_numbers = #tpu.dot_dimension_numbers<[1], [0], [0], [1], [0, 0, 1, 1], [], []>} : vector<256x32xf32>, vector<32x32xf32>, vector<256x32xf32> -> vector<256x32xf32>
    %36 = arith.addf %35, %32 : vector<256x32xf32>
    %c2 = arith.constant 2 : index
    %c0_29 = arith.constant 0 : index
    %c0_30 = arith.constant 0 : index
    %37 = vector.load %arg6[%c2, %c0_29, %c0_30] : memref<3x1x32xf32, #tpu.memory_space<vmem>>, vector<1x1x32xf32>
    %38 = vector.shape_cast %37 : vector<1x1x32xf32> to vector<1x32xf32>
    %39 = vector.broadcast %38 : vector<1x32xf32> to vector<256x32xf32>
    %40 = arith.mulf %36, %39 : vector<256x32xf32>
    %c2_31 = arith.constant 2 : index
    %c0_32 = arith.constant 0 : index
    %c0_33 = arith.constant 0 : index
    %41 = vector.load %arg7[%c2_31, %c0_32, %c0_33] : memref<3x1x32xf32, #tpu.memory_space<vmem>>, vector<1x1x32xf32>
    %42 = vector.shape_cast %41 : vector<1x1x32xf32> to vector<1x32xf32>
    %43 = vector.broadcast %42 : vector<1x32xf32> to vector<256x32xf32>
    %44 = arith.addf %40, %43 : vector<256x32xf32>
    %cst_34 = arith.constant 0.000000e+00 : f32
    %45 = vector.broadcast %cst_34 : f32 to vector<256x32xf32>
    %46 = arith.maximumf %44, %45 : vector<256x32xf32>
    %c0_35 = arith.constant 0 : index
    %c0_36 = arith.constant 0 : index
    %47 = vector.load %arg8[%c0_35, %c0_36] : memref<32x128xf32, #tpu.memory_space<vmem>>, vector<32x128xf32>
    %cst_37 = arith.constant dense<0.000000e+00> : vector<256x128xf32>
    %48 = tpu.matmul %46, %47, %cst_37 {dimension_numbers = #tpu.dot_dimension_numbers<[1], [0], [0], [1], [0, 0, 1, 1], [], []>} : vector<256x32xf32>, vector<32x128xf32>, vector<256x128xf32> -> vector<256x128xf32>
    %c0_38 = arith.constant 0 : index
    %c0_39 = arith.constant 0 : index
    %49 = vector.load %arg9[%c0_38, %c0_39] : memref<1x128xf32, #tpu.memory_space<vmem>>, vector<1x128xf32>
    %50 = vector.broadcast %49 : vector<1x128xf32> to vector<256x128xf32>
    %51 = arith.addf %48, %50 : vector<256x128xf32>
    %c0_40 = arith.constant 0 : index
    %c0_41 = arith.constant 0 : index
    %52 = vector.load %arg10[%c0_40, %c0_41] : memref<256x128xf32, #tpu.memory_space<vmem>>, vector<256x128xf32>
    tpu.vector_store %arg10[%c0_40, %c0_41], %51 {strides = array<i32>} : memref<256x128xf32, #tpu.memory_space<vmem>>, vector<256x128xf32>,
    return
  }
  func.func @transform_0(%arg0: i32) -> (i32, i32) {
    %c0_i32 = arith.constant 0 : i32
    %c0_i32_0 = arith.constant 0 : i32
    return %arg0, %c0_i32 : i32, i32
  }
  func.func @transform_1(%arg0: i32) -> (i32, i32) {
    %c0_i32 = arith.constant 0 : i32
    %c0_i32_0 = arith.constant 0 : i32
    %c0_i32_1 = arith.constant 0 : i32
    return %c0_i32, %c0_i32_0 : i32, i32
  }
  func.func @transform_2(%arg0: i32) -> (i32, i32) {
    %c0_i32 = arith.constant 0 : i32
    %c0_i32_0 = arith.constant 0 : i32
    %c0_i32_1 = arith.constant 0 : i32
    return %c0_i32, %c0_i32_0 : i32, i32
  }
  func.func @transform_3(%arg0: i32) -> (i32, i32) {
    %c0_i32 = arith.constant 0 : i32
    %c0_i32_0 = arith.constant 0 : i32
    %c0_i32_1 = arith.constant 0 : i32
    return %c0_i32, %c0_i32_0 : i32, i32
  }
  func.func @transform_4(%arg0: i32) -> (i32, i32, i32) {
    %c0_i32 = arith.constant 0 : i32
    %c0_i32_0 = arith.constant 0 : i32
    %c0_i32_1 = arith.constant 0 : i32
    %c0_i32_2 = arith.constant 0 : i32
    return %c0_i32, %c0_i32_0, %c0_i32_1 : i32, i32, i32
  }
  func.func @transform_5(%arg0: i32) -> (i32, i32, i32) {
    %c0_i32 = arith.constant 0 : i32
    %c0_i32_0 = arith.constant 0 : i32
    %c0_i32_1 = arith.constant 0 : i32
    %c0_i32_2 = arith.constant 0 : i32
    return %c0_i32, %c0_i32_0, %c0_i32_1 : i32, i32, i32
  }
  func.func @transform_6(%arg0: i32) -> (i32, i32, i32) {
    %c0_i32 = arith.constant 0 : i32
    %c0_i32_0 = arith.constant 0 : i32
    %c0_i32_1 = arith.constant 0 : i32
    %c0_i32_2 = arith.constant 0 : i32
    return %c0_i32, %c0_i32_0, %c0_i32_1 : i32, i32, i32
  }
  func.func @transform_7(%arg0: i32) -> (i32, i32) {
    %c0_i32 = arith.constant 0 : i32
    %c0_i32_0 = arith.constant 0 : i32
    %c0_i32_1 = arith.constant 0 : i32
    return %c0_i32, %c0_i32_0 : i32, i32
  }
  func.func @transform_8(%arg0: i32) -> (i32, i32) {
    %c0_i32 = arith.constant 0 : i32
    %c0_i32_0 = arith.constant 0 : i32
    %c0_i32_1 = arith.constant 0 : i32
    return %c0_i32, %c0_i32_0 : i32, i32
  }
  func.func @transform_9(%arg0: i32) -> (i32, i32) {
    %c0_i32 = arith.constant 0 : i32
    %c0_i32_0 = arith.constant 0 : i32
    return %arg0, %c0_i32 : i32, i32
  }
}

</mosaic_0001>

<llo_original>
// kernel: improved_mlp_pallas.1
$region0: #{improved_mlp_pallas.1}
  #allocation0 [shape = 'u32[]', space=smem, size = 0x4, offset = 0x4, fixed_abs, tag = 'smem constant byte address 0x4 - core index']
  #allocation1 [shape = 'u32[144,128]{1,0:T(1,128)}', space=vmem, size = 0x12000, scoped, tag = 'internal scratch']
  %s0 = inlined_call_operand.vmem [shape: f32[512,16], index: 0, kind: input, shape index: {}]
  %s1 = inlined_call_operand.vmem [shape: f32[16,32], index: 1, kind: input, shape index: {}]
  %s2 = inlined_call_operand.vmem [shape: f32[1,32], index: 2, kind: input, shape index: {}]
  %s3 = inlined_call_operand.vmem [shape: f32[16,32], index: 3, kind: input, shape index: {}]
  %s4 = inlined_call_operand.vmem [shape: f32[2,32,32], index: 4, kind: input, shape index: {}]
  %s5 = inlined_call_operand.vmem [shape: f32[3,1,32], index: 5, kind: input, shape index: {}]
  %s6 = inlined_call_operand.vmem [shape: f32[3,1,32], index: 6, kind: input, shape index: {}]
  %s7 = inlined_call_operand.vmem [shape: f32[32,128], index: 7, kind: input, shape index: {}]
  %s8 = inlined_call_operand.vmem [shape: f32[1,128], index: 8, kind: input, shape index: {}]
  %s9 = inlined_call_operand.vmem [shape: f32[512,128], index: 9, kind: output, shape index: {}]
  %s10 = sld [smem:[#allocation0]]
  $region69: #{improved_mlp_pallas.1} parent=0
    _
  %s12 = ssub.s32 1, %s10
  %s13 = scalar_select 0, %s12, %s10
  loop: start=0, step=1, limit=4
  $region2: #{improved_mlp_pallas.1} parent=0 // loop_pre_header
    _
  $region3: #{improved_mlp_pallas.1} parent=0 // loop_header
    %s15 = sphi 0, %s19
    %p16 = scmp.ge.s32.totalorder %s15, 4
    %s25 = sphi 0, %s27
    %s28 = sphi 0, %s25
    %s29 = sphi 0, %s28
    %s45 = sphi 0, %s29
    %s49 = sphi 0, %s49
    %s51 = sphi 0, %s49
    %s52 = sphi 0, %s51
    %s66 = sphi 0, %s52
    %s70 = sphi 0, %s70
    %s72 = sphi 0, %s70
    %s73 = sphi 0, %s72
    %s87 = sphi 0, %s73
    %s91 = sphi 0, %s91
    %s93 = sphi 0, %s91
    %s94 = sphi 0, %s93
    %s108 = sphi 0, %s94
    %s112 = sphi 0, %s112
    %s114 = sphi 0, %s112
    %s115 = sphi 0, %s114
    %s129 = sphi 0, %s115
    %s133 = sphi 0, %s133
    %s135 = sphi 0, %s133
    %s136 = sphi 0, %s135
    %s150 = sphi 0, %s136
    %s154 = sphi 0, %s154
    %s156 = sphi 0, %s154
    %s157 = sphi 0, %s156
    %s171 = sphi 0, %s157
    %s175 = sphi 0, %s175
    %s177 = sphi 0, %s175
    %s178 = sphi 0, %s177
    %s192 = sphi 0, %s178
    %s196 = sphi 0, %s196
    %s198 = sphi 0, %s196
    %s199 = sphi 0, %s198
    %s213 = sphi 0, %s199
    %s219 = sphi 0, %s221
    %s222 = sphi 0, %s219
    %s223 = sphi 0, %s222
    %s239 = sphi 0, %s223
  $region4: #{improved_mlp_pallas.1} parent=0 // loop_header_branch
    %18 = sbr.rel (%p16) target = $region8
  $region5: #{improved_mlp_pallas.1} parent=0 // loop_body
    %s20 = ssub.s32 %s15, 1
    %s21 = ssub.s32 %s15, 2
    %s22 = sadd.s32 %s15, 1
    %s23 = ssub.s32 %s15, %s22
    %p24 = scmp.eq.s32.totalorder %s23, 0
    %s26 = sadd.s32 %s25, 1
    %s27 = scalar_select %p24, %s25, %s26
    %p30 = pneg %p24
    %p31 = scmp.eq.s32.totalorder %s15, 1
    %p32 = por %p30, %p31
    %p33 = scmp.ne.s32.totalorder %s25, %s28
    %p34 = scmp.eq.s32.totalorder %s15, 0
    %p35 = por %p33, %p34
    %p36 = scmp.ne.s32.totalorder %s25, %s28
    %p37 = scmp.eq.s32.totalorder %s20, 1
    %p38 = por %p36, %p37
    %p39 = scmp.ne.s32.totalorder %s28, %s29
    %p40 = scmp.eq.s32.totalorder %s20, 0
    %p41 = por %p39, %p40
    %p42 = scmp.ne.s32.totalorder %s28, %s29
    %p43 = scmp.eq.s32.totalorder %s21, 1
    %p44 = por %p42, %p43
    %p46 = scmp.ne.s32.totalorder %s29, %s45
    %p47 = scmp.eq.s32.totalorder %s21, 0
    %p48 = por %p46, %p47
    %s50 = sadd.s32 %s49, 1
    %p53 = scmp.eq.s32.totalorder %s15, 1
    %p54 = scmp.ne.s32.totalorder %s49, %s51
    %p55 = scmp.eq.s32.totalorder %s15, 0
    %p56 = por %p54, %p55
    %p57 = scmp.ne.s32.totalorder %s49, %s51
    %p58 = scmp.eq.s32.totalorder %s20, 1
    %p59 = por %p57, %p58
    %p60 = scmp.ne.s32.totalorder %s51, %s52
    %p61 = scmp.eq.s32.totalorder %s20, 0
    %p62 = por %p60, %p61
    %p63 = scmp.ne.s32.totalorder %s51, %s52
    %p64 = scmp.eq.s32.totalorder %s21, 1
    %p65 = por %p63, %p64
    %p67 = scmp.ne.s32.totalorder %s52, %s66
    %p68 = scmp.eq.s32.totalorder %s21, 0
    %p69 = por %p67, %p68
    %s71 = sadd.s32 %s70, 1
    %p74 = scmp.eq.s32.totalorder %s15, 1
    %p75 = scmp.ne.s32.totalorder %s70, %s72
    %p76 = scmp.eq.s32.totalorder %s15, 0
    %p77 = por %p75, %p76
    %p78 = scmp.ne.s32.totalorder %s70, %s72
    %p79 = scmp.eq.s32.totalorder %s20, 1
    %p80 = por %p78, %p79
    %p81 = scmp.ne.s32.totalorder %s72, %s73
    %p82 = scmp.eq.s32.totalorder %s20, 0
    %p83 = por %p81, %p82
    %p84 = scmp.ne.s32.totalorder %s72, %s73
    %p85 = scmp.eq.s32.totalorder %s21, 1
    %p86 = por %p84, %p85
    %p88 = scmp.ne.s32.totalorder %s73, %s87
    %p89 = scmp.eq.s32.totalorder %s21, 0
    %p90 = por %p88, %p89
    %s92 = sadd.s32 %s91, 1
    %p95 = scmp.eq.s32.totalorder %s15, 1
    %p96 = scmp.ne.s32.totalorder %s91, %s93
    %p97 = scmp.eq.s32.totalorder %s15, 0
    %p98 = por %p96, %p97
    %p99 = scmp.ne.s32.totalorder %s91, %s93
    %p100 = scmp.eq.s32.totalorder %s20, 1
    %p101 = por %p99, %p100
    %p102 = scmp.ne.s32.totalorder %s93, %s94
    %p103 = scmp.eq.s32.totalorder %s20, 0
    %p104 = por %p102, %p103
    %p105 = scmp.ne.s32.totalorder %s93, %s94
    %p106 = scmp.eq.s32.totalorder %s21, 1
    %p107 = por %p105, %p106
    %p109 = scmp.ne.s32.totalorder %s94, %s108
    %p110 = scmp.eq.s32.totalorder %s21, 0
    %p111 = por %p109, %p110
    %s113 = sadd.s32 %s112, 1
    %p116 = scmp.eq.s32.totalorder %s15, 1
    %p117 = scmp.ne.s32.totalorder %s112, %s114
    %p118 = scmp.eq.s32.totalorder %s15, 0
    %p119 = por %p117, %p118
    %p120 = scmp.ne.s32.totalorder %s112, %s114
    %p121 = scmp.eq.s32.totalorder %s20, 1
    %p122 = por %p120, %p121
    %p123 = scmp.ne.s32.totalorder %s114, %s115
    %p124 = scmp.eq.s32.totalorder %s20, 0
    %p125 = por %p123, %p124
    %p126 = scmp.ne.s32.totalorder %s114, %s115
    %p127 = scmp.eq.s32.totalorder %s21, 1
    %p128 = por %p126, %p127
    %p130 = scmp.ne.s32.totalorder %s115, %s129
    %p131 = scmp.eq.s32.totalorder %s21, 0
    %p132 = por %p130, %p131
    %s134 = sadd.s32 %s133, 1
    %p137 = scmp.eq.s32.totalorder %s15, 1
    %p138 = scmp.ne.s32.totalorder %s133, %s135
    %p139 = scmp.eq.s32.totalorder %s15, 0
    %p140 = por %p138, %p139
    %p141 = scmp.ne.s32.totalorder %s133, %s135
    %p142 = scmp.eq.s32.totalorder %s20, 1
    %p143 = por %p141, %p142
    %p144 = scmp.ne.s32.totalorder %s135, %s136
    %p145 = scmp.eq.s32.totalorder %s20, 0
    %p146 = por %p144, %p145
    %p147 = scmp.ne.s32.totalorder %s135, %s136
    %p148 = scmp.eq.s32.totalorder %s21, 1
    %p149 = por %p147, %p148
    %p151 = scmp.ne.s32.totalorder %s136, %s150
    %p152 = scmp.eq.s32.totalorder %s21, 0
    %p153 = por %p151, %p152
    %s155 = sadd.s32 %s154, 1
    %p158 = scmp.eq.s32.totalorder %s15, 1
    %p159 = scmp.ne.s32.totalorder %s154, %s156
    %p160 = scmp.eq.s32.totalorder %s15, 0
    %p161 = por %p159, %p160
    %p162 = scmp.ne.s32.totalorder %s154, %s156
    %p163 = scmp.eq.s32.totalorder %s20, 1
    %p164 = por %p162, %p163
    %p165 = scmp.ne.s32.totalorder %s156, %s157
    %p166 = scmp.eq.s32.totalorder %s20, 0
    %p167 = por %p165, %p166
    %p168 = scmp.ne.s32.totalorder %s156, %s157
    %p169 = scmp.eq.s32.totalorder %s21, 1
    %p170 = por %p168, %p169
    %p172 = scmp.ne.s32.totalorder %s157, %s171
    %p173 = scmp.eq.s32.totalorder %s21, 0
    %p174 = por %p172, %p173
    %s176 = sadd.s32 %s175, 1
    %p179 = scmp.eq.s32.totalorder %s15, 1
    %p180 = scmp.ne.s32.totalorder %s175, %s177
    %p181 = scmp.eq.s32.totalorder %s15, 0
    %p182 = por %p180, %p181
    %p183 = scmp.ne.s32.totalorder %s175, %s177
    %p184 = scmp.eq.s32.totalorder %s20, 1
    %p185 = por %p183, %p184
    %p186 = scmp.ne.s32.totalorder %s177, %s178
    %p187 = scmp.eq.s32.totalorder %s20, 0
    %p188 = por %p186, %p187
    %p189 = scmp.ne.s32.totalorder %s177, %s178
    %p190 = scmp.eq.s32.totalorder %s21, 1
    %p191 = por %p189, %p190
    %p193 = scmp.ne.s32.totalorder %s178, %s192
    %p194 = scmp.eq.s32.totalorder %s21, 0
    %p195 = por %p193, %p194
    %s197 = sadd.s32 %s196, 1
    %p200 = scmp.eq.s32.totalorder %s15, 1
    %p201 = scmp.ne.s32.totalorder %s196, %s198
    %p202 = scmp.eq.s32.totalorder %s15, 0
    %p203 = por %p201, %p202
    %p204 = scmp.ne.s32.totalorder %s196, %s198
    %p205 = scmp.eq.s32.totalorder %s20, 1
    %p206 = por %p204, %p205
    %p207 = scmp.ne.s32.totalorder %s198, %s199
    %p208 = scmp.eq.s32.totalorder %s20, 0
    %p209 = por %p207, %p208
    %p210 = scmp.ne.s32.totalorder %s198, %s199
    %p211 = scmp.eq.s32.totalorder %s21, 1
    %p212 = por %p210, %p211
    %p214 = scmp.ne.s32.totalorder %s199, %s213
    %p215 = scmp.eq.s32.totalorder %s21, 0
    %p216 = por %p214, %p215
    %s217 = ssub.s32 %s15, %s22
    %p218 = scmp.eq.s32.totalorder %s217, 0
    %s220 = sadd.s32 %s219, 1
    %s221 = scalar_select %p218, %s219, %s220
    %p224 = pneg %p218
    %p225 = scmp.eq.s32.totalorder %s15, 1
    %p226 = por %p224, %p225
    %p227 = scmp.ne.s32.totalorder %s219, %s222
    %p228 = scmp.eq.s32.totalorder %s15, 0
    %p229 = por %p227, %p228
    %p230 = scmp.ne.s32.totalorder %s219, %s222
    %p231 = scmp.eq.s32.totalorder %s20, 1
    %p232 = por %p230, %p231
    %p233 = scmp.ne.s32.totalorder %s222, %s223
    %p234 = scmp.eq.s32.totalorder %s20, 0
    %p235 = por %p233, %p234
    %p236 = scmp.ne.s32.totalorder %s222, %s223
    %p237 = scmp.eq.s32.totalorder %s21, 1
    %p238 = por %p236, %p237
    %p240 = scmp.ne.s32.totalorder %s223, %s239
    %p241 = scmp.eq.s32.totalorder %s21, 0
    %p242 = por %p240, %p241
    %p243 = scmp.le.s32.totalorder 1, %s15
    %p244 = scmp.lt.s32.totalorder %s15, 3
    %p245 = pnand %p243, %p244
    %p246 = pneg %p245
    // Predicated region
    $region9: #{improved_mlp_pallas.1} parent=5 // pred_check
      _
    $region10: #{improved_mlp_pallas.1} parent=5 // pred_check_branch
      %248 = sbr.rel (%p245) target = $region12
    $region11: #{improved_mlp_pallas.1} parent=5 // pred_region
      %s249 = ssub.s32 %s15, 1
      // Predicated region
      $region13: #{improved_mlp_pallas.1} parent=11 // pred_check
        %p250 = pneg %p62
      $region14: #{improved_mlp_pallas.1} parent=11 // pred_check_branch
        %252 = sbr.rel (%p250) target = $region16
      $region15: #{improved_mlp_pallas.1} parent=11 // pred_region
        _
      $region16: #{improved_mlp_pallas.1} parent=11 // pred_fallthru
        _
      // Predicated region
      $region17: #{improved_mlp_pallas.1} parent=11 // pred_check
        %p253 = pneg %p83
      $region18: #{improved_mlp_pallas.1} parent=11 // pred_check_branch
        %255 = sbr.rel (%p253) target = $region20
      $region19: #{improved_mlp_pallas.1} parent=11 // pred_region
        _
      $region20: #{improved_mlp_pallas.1} parent=11 // pred_fallthru
        _
      // Predicated region
      $region21: #{improved_mlp_pallas.1} parent=11 // pred_check
        %p256 = pneg %p104
      $region22: #{improved_mlp_pallas.1} parent=11 // pred_check_branch
        %258 = sbr.rel (%p256) target = $region24
      $region23: #{improved_mlp_pallas.1} parent=11 // pred_region
        _
      $region24: #{improved_mlp_pallas.1} parent=11 // pred_fallthru
        _
      // Predicated region
      $region25: #{improved_mlp_pallas.1} parent=11 // pred_check
        %p259 = pneg %p125
      $region26: #{improved_mlp_pallas.1} parent=11 // pred_check_branch
        %261 = sbr.rel (%p259) target = $region28
      $region27: #{improved_mlp_pallas.1} parent=11 // pred_region
        _
      $region28: #{improved_mlp_pallas.1} parent=11 // pred_fallthru
        _
      // Predicated region
      $region29: #{improved_mlp_pallas.1} parent=11 // pred_check
        %p262 = pneg %p146
      $region30: #{improved_mlp_pallas.1} parent=11 // pred_check_branch
        %264 = sbr.rel (%p262) target = $region32
      $region31: #{improved_mlp_pallas.1} parent=11 // pred_region
        _
      $region32: #{improved_mlp_pallas.1} parent=11 // pred_fallthru
        _
      // Predicated region
      $region33: #{improved_mlp_pallas.1} parent=11 // pred_check
        %p265 = pneg %p167
      $region34: #{improved_mlp_pallas.1} parent=11 // pred_check_branch
        %267 = sbr.rel (%p265) target = $region36
      $region35: #{improved_mlp_pallas.1} parent=11 // pred_region
        _
      $region36: #{improved_mlp_pallas.1} parent=11 // pred_fallthru
        _
      // Predicated region
      $region37: #{improved_mlp_pallas.1} parent=11 // pred_check
        %p268 = pneg %p188
      $region38: #{improved_mlp_pallas.1} parent=11 // pred_check_branch
        %270 = sbr.rel (%p268) target = $region40
      $region39: #{improved_mlp_pallas.1} parent=11 // pred_region
        _
      $region40: #{improved_mlp_pallas.1} parent=11 // pred_fallthru
        _
      // Predicated region
      $region41: #{improved_mlp_pallas.1} parent=11 // pred_check
        %p271 = pneg %p209
      $region42: #{improved_mlp_pallas.1} parent=11 // pred_check_branch
        %273 = sbr.rel (%p271) target = $region44
      $region43: #{improved_mlp_pallas.1} parent=11 // pred_region
        _
      $region44: #{improved_mlp_pallas.1} parent=11 // pred_fallthru
        _
    $region12: #{improved_mlp_pallas.1} parent=5 // pred_fallthru
      _
    %p274 = scmp.lt.s32.totalorder %s15, 2
    // Predicated region
    $region45: #{improved_mlp_pallas.1} parent=5 // pred_check
      %p275 = pneg %p274
    $region46: #{improved_mlp_pallas.1} parent=5 // pred_check_branch
      %277 = sbr.rel (%p275) target = $region48
    $region47: #{improved_mlp_pallas.1} parent=5 // pred_region
      // Predicated region
      $region49: #{improved_mlp_pallas.1} parent=47 // pred_check
        %p278 = pneg %p35
      $region50: #{improved_mlp_pallas.1} parent=47 // pred_check_branch
        %280 = sbr.rel (%p278) target = $region52
      $region51: #{improved_mlp_pallas.1} parent=47 // pred_region
        %s281 = smul.u32 32, %s15
        %p282 = scmp.lt.s32.totalorder %s281, 63
        %s283 = scalar_select %p282, %s281, 63
        %s284 = smul.addr %s283, 8
        %s285 = scalar_lea.vmem %s0, %s284
        %s286 = smul.u32 32, %s15
      $region52: #{improved_mlp_pallas.1} parent=47 // pred_fallthru
        _
    $region48: #{improved_mlp_pallas.1} parent=5 // pred_fallthru
      _
    %p287 = scmp.le.s32.totalorder 1, %s15
    %p288 = scmp.lt.s32.totalorder %s15, 3
    %p289 = pnand %p287, %p288
    %p290 = pneg %p289
    // Predicated region
    $region53: #{improved_mlp_pallas.1} parent=5 // pred_check
      _
    $region54: #{improved_mlp_pallas.1} parent=5 // pred_check_branch
      %292 = sbr.rel (%p289) target = $region56
    $region55: #{improved_mlp_pallas.1} parent=5 // pred_region
      %s293 = ssub.s32 %s15, 1
      %s294 = smul.u32 32, %s20
      %p295 = scmp.lt.s32.totalorder %s294, 63
      %s296 = scalar_select %p295, %s294, 63
      %s297 = smul.addr %s296, 8
      %s298 = scalar_lea.vmem %s0, %s297
      %p299 = pneg %p41
      %p300 = pneg %p38
      %p301 = pneg %p62
      %p302 = pneg %p59
      %p303 = pneg %p83
      %p304 = pneg %p80
      %p305 = pneg %p104
      %p306 = pneg %p101
      %p307 = pneg %p125
      %p308 = pneg %p122
      %p309 = pneg %p146
      %p310 = pneg %p143
      %p311 = pneg %p167
      %p312 = pneg %p164
      %p313 = pneg %p188
      %p314 = pneg %p185
      %p315 = pneg %p209
      %p316 = pneg %p206
      %p317 = pneg %p235
      %p318 = pneg %p232
      %s319 = smul.u32 32, %s20
      %p320 = scmp.lt.s32.totalorder %s319, 63
      %s321 = scalar_select %p320, %s319, 63
      %s322 = smul.addr %s321, 8
      %s323 = scalar_lea.vmem %s9, %s322
      %s324 = smul.u32 32, %s20
      %p325 = scmp.lt.s32.totalorder %s324, 63
      %s326 = scalar_select %p325, %s324, 63
      %s327 = smul.addr %s326, 8
      %s328 = scalar_lea.vmem %s0, %s327
      %s329 = smul.u32 32, %s20
      %s330 = smul.u32 32, %s20
      %p331 = scmp.lt.s32.totalorder %s330, 63
      %s332 = scalar_select %p331, %s330, 63
      %s333 = smul.addr %s332, 8
      %s334 = scalar_lea.vmem %s9, %s333
      %s335 = smul.u32 32, %s20
      %v336 = vld [vmem:[%s328] sm:$0xff]
      %v337 = vld [vmem:[%s328 + $0x8] sm:$0xff]
      %v338 = vld [vmem:[%s328 + $0x10] sm:$0xff]
      %v339 = vld [vmem:[%s328 + $0x18] sm:$0xff]
      %v340 = vld [vmem:[%s328 + $0x20] sm:$0xff]
      %v341 = vld [vmem:[%s328 + $0x28] sm:$0xff]
      %v342 = vld [vmem:[%s328 + $0x30] sm:$0xff]
      %v343 = vld [vmem:[%s328 + $0x38] sm:$0xff]
      %v344 = vld [vmem:[%s328 + $0x40] sm:$0xff]
      %v345 = vld [vmem:[%s328 + $0x48] sm:$0xff]
      %v346 = vld [vmem:[%s328 + $0x50] sm:$0xff]
      %v347 = vld [vmem:[%s328 + $0x58] sm:$0xff]
      %v348 = vld [vmem:[%s328 + $0x60] sm:$0xff]
      %v349 = vld [vmem:[%s328 + $0x68] sm:$0xff]
      %v350 = vld [vmem:[%s328 + $0x70] sm:$0xff]
      %v351 = vld [vmem:[%s328 + $0x78] sm:$0xff]
      %v352 = vld [vmem:[%s328 + $0x80] sm:$0xff]
      %v353 = vld [vmem:[%s328 + $0x88] sm:$0xff]
      %v354 = vld [vmem:[%s328 + $0x90] sm:$0xff]
      %v355 = vld [vmem:[%s328 + $0x98] sm:$0xff]
      %v356 = vld [vmem:[%s328 + $0xa0] sm:$0xff]
      %v357 = vld [vmem:[%s328 + $0xa8] sm:$0xff]
      %v358 = vld [vmem:[%s328 + $0xb0] sm:$0xff]
      %v359 = vld [vmem:[%s328 + $0xb8] sm:$0xff]
      %v360 = vld [vmem:[%s328 + $0xc0] sm:$0xff]
      %v361 = vld [vmem:[%s328 + $0xc8] sm:$0xff]
      %v362 = vld [vmem:[%s328 + $0xd0] sm:$0xff]
      %v363 = vld [vmem:[%s328 + $0xd8] sm:$0xff]
      %v364 = vld [vmem:[%s328 + $0xe0] sm:$0xff]
      %v365 = vld [vmem:[%s328 + $0xe8] sm:$0xff]
      %v366 = vld [vmem:[%s328 + $0xf0] sm:$0xff]
      %v367 = vld [vmem:[%s328 + $0xf8] sm:$0xff]
      %v368 = vld [vmem:[%s1] sm:$0xff]
      %v369 = vld [vmem:[%s1 + $0x8] sm:$0xff]
      %v370 = vld [vmem:[%s2] sm:$0x1]
      %v372 = vlaneseq
      %v373 = vshrl.u32 %v372, 7
      %v374 = vsub.s32 0, %v373
      %v375 = vrot.slane %v370, %v374
      %vm377 = vcmask 130048
      %v379 = vsel %vm377, %v336, 0
      %v382 = vsel %vm377, %v337, 0
      %v385 = vsel %vm377, %v338, 0
      %v388 = vsel %vm377, %v339, 0
      %v391 = vsel %vm377, %v340, 0
      %v394 = vsel %vm377, %v341, 0
      %v397 = vsel %vm377, %v342, 0
      %v400 = vsel %vm377, %v343, 0
      %v403 = vsel %vm377, %v344, 0
      %v406 = vsel %vm377, %v345, 0
      %v409 = vsel %vm377, %v346, 0
      %v412 = vsel %vm377, %v347, 0
      %v415 = vsel %vm377, %v348, 0
      %v418 = vsel %vm377, %v349, 0
      %v421 = vsel %vm377, %v350, 0
      %v424 = vsel %vm377, %v351, 0
      %v427 = vsel %vm377, %v352, 0
      %v430 = vsel %vm377, %v353, 0
      %v433 = vsel %vm377, %v354, 0
      %v436 = vsel %vm377, %v355, 0
      %v439 = vsel %vm377, %v356, 0
      %v442 = vsel %vm377, %v357, 0
      %v445 = vsel %vm377, %v358, 0
      %v448 = vsel %vm377, %v359, 0
      %v451 = vsel %vm377, %v360, 0
      %v454 = vsel %vm377, %v361, 0
      %v457 = vsel %vm377, %v362, 0
      %v460 = vsel %vm377, %v363, 0
      %v463 = vsel %vm377, %v364, 0
      %v466 = vsel %vm377, %v365, 0
      %v469 = vsel %vm377, %v366, 0
      %v472 = vsel %vm377, %v367, 0
      %474 = vmatprep.subr.mxu0 0.0
      %475 = vmatpush1.msra.mxu0 %v368
      %476 = vmatprep.subr.mxu0 0.0
      %477 = vmatpush1.msra.mxu0 %v369
      %478 = vmatprep.subr.mxu0 0.0
      %479 = vmatpush1.msra.mxu0 0.0
      %480 = vmatprep.subr.mxu0 0.0
      %481 = vmatpush1.msra.mxu0 0.0
      %482 = vmatprep.subr.mxu0 0.0
      %483 = vmatpush1.msra.mxu0 0.0
      %484 = vmatprep.subr.mxu0 0.0
      %485 = vmatpush1.msra.mxu0 0.0
      %486 = vmatprep.subr.mxu0 0.0
      %487 = vmatpush1.msra.mxu0 0.0
      %488 = vmatprep.subr.mxu0 0.0
      %489 = vmatpush1.msra.mxu0 0.0
      %490 = vmatprep.subr.mxu0 0.0
      %491 = vmatpush1.msra.mxu0 0.0
      %492 = vmatprep.subr.mxu0 0.0
      %493 = vmatpush1.msra.mxu0 0.0
      %494 = vmatprep.subr.mxu0 0.0
      %495 = vmatpush1.msra.mxu0 0.0
      %496 = vmatprep.subr.mxu0 0.0
      %497 = vmatpush1.msra.mxu0 0.0
      %498 = vmatprep.subr.mxu0 0.0
      %499 = vmatpush1.msra.mxu0 0.0
      %500 = vmatprep.subr.mxu0 0.0
      %501 = vmatpush1.msra.mxu0 0.0
      %502 = vmatprep.subr.mxu0 0.0
      %503 = vmatpush1.msra.mxu0 0.0
      %504 = vmatprep.subr.mxu0 0.0
      %505 = vmatpush1.msra.mxu0 0.0
      %506 = vmatprep.subr.mxu0 0.0
      %507 = vmatpush1.msra.mxu0 0.0
      %508 = vmatprep.subr.mxu0 0.0
      %509 = vmatpush1.msra.mxu0 0.0
      %510 = vmatprep.subr.mxu0 0.0
      %511 = vmatpush1.msra.mxu0 0.0
      %512 = vmatprep.subr.mxu0 0.0
      %513 = vmatpush1.msra.mxu0 0.0
      %514 = vmatprep.subr.mxu0 0.0
      %515 = vmatpush1.msra.mxu0 0.0
      %516 = vmatprep.subr.mxu0 0.0
      %517 = vmatpush1.msra.mxu0 0.0
      %518 = vmatprep.subr.mxu0 0.0
      %519 = vmatpush1.msra.mxu0 0.0
      %520 = vmatprep.subr.mxu0 0.0
      %521 = vmatpush1.msra.mxu0 0.0
      %522 = vmatprep.subr.mxu0 0.0
      %523 = vmatpush1.msra.mxu0 0.0
      %524 = vmatprep.subr.mxu0 0.0
      %525 = vmatpush1.msra.mxu0 0.0
      %526 = vmatprep.subr.mxu0 0.0
      %527 = vmatpush1.msra.mxu0 0.0
      %528 = vmatprep.subr.mxu0 0.0
      %529 = vmatpush1.msra.mxu0 0.0
      %530 = vmatprep.subr.mxu0 0.0
      %531 = vmatpush1.msra.mxu0 0.0
      %532 = vmatprep.subr.mxu0 0.0
      %533 = vmatpush1.msra.mxu0 0.0
      %534 = vmatprep.subr.mxu0 0.0
      %535 = vmatpush1.msra.mxu0 0.0
      %536 = vmatprep.subr.mxu0 0.0
      %537 = vmatpush1.msra.mxu0 0.0
      %538 = vmatprep.mubr.f32.mxu0 0.0
      %539 = vmatmul.mubr.f32.gmra.mrb[0].mxu0 %v379
      %v540 = vpop.f32.mrb[0].mxu0
      %v541 = vadd.f32 %v375, %v540
      %v542 = vpop.f32.mrb[0].mxu0
      %543 = vmatprep.mubr.f32.mxu0 0.0
      %544 = vmatmul.mubr.f32.gmra.mrb[0].mxu0 %v382
      %v545 = vpop.f32.mrb[0].mxu0
      %v546 = vadd.f32 %v375, %v545
      %v547 = vpop.f32.mrb[0].mxu0
      %548 = vmatprep.mubr.f32.mxu0 0.0
      %549 = vmatmul.mubr.f32.gmra.mrb[0].mxu0 %v385
      %v550 = vpop.f32.mrb[0].mxu0
      %v551 = vadd.f32 %v375, %v550
      %v552 = vpop.f32.mrb[0].mxu0
      %553 = vmatprep.mubr.f32.mxu0 0.0
      %554 = vmatmul.mubr.f32.gmra.mrb[0].mxu0 %v388
      %v555 = vpop.f32.mrb[0].mxu0
      %v556 = vadd.f32 %v375, %v555
      %v557 = vpop.f32.mrb[0].mxu0
      %558 = vmatprep.mubr.f32.mxu0 0.0
      %559 = vmatmul.mubr.f32.gmra.mrb[0].mxu0 %v391
      %v560 = vpop.f32.mrb[0].mxu0
      %v561 = vadd.f32 %v375, %v560
      %v562 = vpop.f32.mrb[0].mxu0
      %563 = vmatprep.mubr.f32.mxu0 0.0
      %564 = vmatmul.mubr.f32.gmra.mrb[0].mxu0 %v394
      %v565 = vpop.f32.mrb[0].mxu0
      %v566 = vadd.f32 %v375, %v565
      %v567 = vpop.f32.mrb[0].mxu0
      %568 = vmatprep.mubr.f32.mxu0 0.0
      %569 = vmatmul.mubr.f32.gmra.mrb[0].mxu0 %v397
      %v570 = vpop.f32.mrb[0].mxu0
      %v571 = vadd.f32 %v375, %v570
      %v572 = vpop.f32.mrb[0].mxu0
      %573 = vmatprep.mubr.f32.mxu0 0.0
      %574 = vmatmul.mubr.f32.gmra.mrb[0].mxu0 %v400
      %v575 = vpop.f32.mrb[0].mxu0
      %v576 = vadd.f32 %v375, %v575
      %v577 = vpop.f32.mrb[0].mxu0
      %578 = vmatprep.mubr.f32.mxu0 0.0
      %579 = vmatmul.mubr.f32.gmra.mrb[0].mxu0 %v403
      %v580 = vpop.f32.mrb[0].mxu0
      %v581 = vadd.f32 %v375, %v580
      %v582 = vpop.f32.mrb[0].mxu0
      %583 = vmatprep.mubr.f32.mxu0 0.0
      %584 = vmatmul.mubr.f32.gmra.mrb[0].mxu0 %v406
      %v585 = vpop.f32.mrb[0].mxu0
      %v586 = vadd.f32 %v375, %v585
      %v587 = vpop.f32.mrb[0].mxu0
      %588 = vmatprep.mubr.f32.mxu0 0.0
      %589 = vmatmul.mubr.f32.gmra.mrb[0].mxu0 %v409
      %v590 = vpop.f32.mrb[0].mxu0
      %v591 = vadd.f32 %v375, %v590
      %v592 = vpop.f32.mrb[0].mxu0
      %593 = vmatprep.mubr.f32.mxu0 0.0
      %594 = vmatmul.mubr.f32.gmra.mrb[0].mxu0 %v412
      %v595 = vpop.f32.mrb[0].mxu0
      %v596 = vadd.f32 %v375, %v595
      %v597 = vpop.f32.mrb[0].mxu0
      %598 = vmatprep.mubr.f32.mxu0 0.0
      %599 = vmatmul.mubr.f32.gmra.mrb[0].mxu0 %v415
      %v600 = vpop.f32.mrb[0].mxu0
      %v601 = vadd.f32 %v375, %v600
      %v602 = vpop.f32.mrb[0].mxu0
      %603 = vmatprep.mubr.f32.mxu0 0.0
      %604 = vmatmul.mubr.f32.gmra.mrb[0].mxu0 %v418
      %v605 = vpop.f32.mrb[0].mxu0
      %v606 = vadd.f32 %v375, %v605
      %v607 = vpop.f32.mrb[0].mxu0
      %608 = vmatprep.mubr.f32.mxu0 0.0
      %609 = vmatmul.mubr.f32.gmra.mrb[0].mxu0 %v421
      %v610 = vpop.f32.mrb[0].mxu0
      %v611 = vadd.f32 %v375, %v610
      %v612 = vpop.f32.mrb[0].mxu0
      %613 = vmatprep.mubr.f32.mxu0 0.0
      %614 = vmatmul.mubr.f32.gmra.mrb[0].mxu0 %v424
      %v615 = vpop.f32.mrb[0].mxu0
      %v616 = vadd.f32 %v375, %v615
      %v617 = vpop.f32.mrb[0].mxu0
      %618 = vmatprep.mubr.f32.mxu0 0.0
      %619 = vmatmul.mubr.f32.gmra.mrb[0].mxu0 %v427
      %v620 = vpop.f32.mrb[0].mxu0
      %v621 = vadd.f32 %v375, %v620
      %v622 = vpop.f32.mrb[0].mxu0
      %623 = vmatprep.mubr.f32.mxu0 0.0
      %624 = vmatmul.mubr.f32.gmra.mrb[0].mxu0 %v430
      %v625 = vpop.f32.mrb[0].mxu0
      %v626 = vadd.f32 %v375, %v625
      %v627 = vpop.f32.mrb[0].mxu0
      %628 = vmatprep.mubr.f32.mxu0 0.0
      %629 = vmatmul.mubr.f32.gmra.mrb[0].mxu0 %v433
      %v630 = vpop.f32.mrb[0].mxu0
      %v631 = vadd.f32 %v375, %v630
      %v632 = vpop.f32.mrb[0].mxu0
      %633 = vmatprep.mubr.f32.mxu0 0.0
      %634 = vmatmul.mubr.f32.gmra.mrb[0].mxu0 %v436
      %v635 = vpop.f32.mrb[0].mxu0
      %v636 = vadd.f32 %v375, %v635
      %v637 = vpop.f32.mrb[0].mxu0
      %638 = vmatprep.mubr.f32.mxu0 0.0
      %639 = vmatmul.mubr.f32.gmra.mrb[0].mxu0 %v439
      %v640 = vpop.f32.mrb[0].mxu0
      %v641 = vadd.f32 %v375, %v640
      %v642 = vpop.f32.mrb[0].mxu0
      %643 = vmatprep.mubr.f32.mxu0 0.0
      %644 = vmatmul.mubr.f32.gmra.mrb[0].mxu0 %v442
      %v645 = vpop.f32.mrb[0].mxu0
      %v646 = vadd.f32 %v375, %v645
      %v647 = vpop.f32.mrb[0].mxu0
      %648 = vmatprep.mubr.f32.mxu0 0.0
      %649 = vmatmul.mubr.f32.gmra.mrb[0].mxu0 %v445
      %v650 = vpop.f32.mrb[0].mxu0
      %v651 = vadd.f32 %v375, %v650
      %v652 = vpop.f32.mrb[0].mxu0
      %653 = vmatprep.mubr.f32.mxu0 0.0
      %654 = vmatmul.mubr.f32.gmra.mrb[0].mxu0 %v448
      %v655 = vpop.f32.mrb[0].mxu0
      %v656 = vadd.f32 %v375, %v655
      %v657 = vpop.f32.mrb[0].mxu0
      %658 = vmatprep.mubr.f32.mxu0 0.0
      %659 = vmatmul.mubr.f32.gmra.mrb[0].mxu0 %v451
      %v660 = vpop.f32.mrb[0].mxu0
      %v661 = vadd.f32 %v375, %v660
      %v662 = vpop.f32.mrb[0].mxu0
      %663 = vmatprep.mubr.f32.mxu0 0.0
      %664 = vmatmul.mubr.f32.gmra.mrb[0].mxu0 %v454
      %v665 = vpop.f32.mrb[0].mxu0
      %v666 = vadd.f32 %v375, %v665
      %v667 = vpop.f32.mrb[0].mxu0
      %668 = vmatprep.mubr.f32.mxu0 0.0
      %669 = vmatmul.mubr.f32.gmra.mrb[0].mxu0 %v457
      %v670 = vpop.f32.mrb[0].mxu0
      %v671 = vadd.f32 %v375, %v670
      %v672 = vpop.f32.mrb[0].mxu0
      %673 = vmatprep.mubr.f32.mxu0 0.0
      %674 = vmatmul.mubr.f32.gmra.mrb[0].mxu0 %v460
      %v675 = vpop.f32.mrb[0].mxu0
      %v676 = vadd.f32 %v375, %v675
      %v677 = vpop.f32.mrb[0].mxu0
      %678 = vmatprep.mubr.f32.mxu0 0.0
      %679 = vmatmul.mubr.f32.gmra.mrb[0].mxu0 %v463
      %v680 = vpop.f32.mrb[0].mxu0
      %v681 = vadd.f32 %v375, %v680
      %v682 = vpop.f32.mrb[0].mxu0
      %683 = vmatprep.mubr.f32.mxu0 0.0
      %684 = vmatmul.mubr.f32.gmra.mrb[0].mxu0 %v466
      %v685 = vpop.f32.mrb[0].mxu0
      %v686 = vadd.f32 %v375, %v685
      %v687 = vpop.f32.mrb[0].mxu0
      %688 = vmatprep.mubr.f32.mxu0 0.0
      %689 = vmatmul.mubr.f32.gmra.mrb[0].mxu0 %v469
      %v690 = vpop.f32.mrb[0].mxu0
      %v691 = vadd.f32 %v375, %v690
      %v692 = vpop.f32.mrb[0].mxu0
      %693 = vmatprep.mubr.f32.mxu0 0.0
      %694 = vmatmul.mubr.f32.gmra.mrb[0].mxu0 %v472
      %v695 = vpop.f32.mrb[0].mxu0
      %v696 = vadd.f32 %v375, %v695
      %v697 = vpop.f32.mrb[0].mxu0
      %698 = vdwg.mxu0
      %v699 = vld [vmem:[%s3] sm:$0xff]
      %v700 = vld [vmem:[%s3 + $0x8] sm:$0xff]
      %701 = vmatprep.subr.mxu0 0.0
      %702 = vmatpush1.msra.mxu0 %v699
      %703 = vmatprep.subr.mxu0 0.0
      %704 = vmatpush1.msra.mxu0 %v700
      %705 = vmatprep.subr.mxu0 0.0
      %706 = vmatpush1.msra.mxu0 0.0
      %707 = vmatprep.subr.mxu0 0.0
      %708 = vmatpush1.msra.mxu0 0.0
      %709 = vmatprep.subr.mxu0 0.0
      %710 = vmatpush1.msra.mxu0 0.0
      %711 = vmatprep.subr.mxu0 0.0
      %712 = vmatpush1.msra.mxu0 0.0
      %713 = vmatprep.subr.mxu0 0.0
      %714 = vmatpush1.msra.mxu0 0.0
      %715 = vmatprep.subr.mxu0 0.0
      %716 = vmatpush1.msra.mxu0 0.0
      %717 = vmatprep.subr.mxu0 0.0
      %718 = vmatpush1.msra.mxu0 0.0
      %719 = vmatprep.subr.mxu0 0.0
      %720 = vmatpush1.msra.mxu0 0.0
      %721 = vmatprep.subr.mxu0 0.0
      %722 = vmatpush1.msra.mxu0 0.0
      %723 = vmatprep.subr.mxu0 0.0
      %724 = vmatpush1.msra.mxu0 0.0
      %725 = vmatprep.subr.mxu0 0.0
      %726 = vmatpush1.msra.mxu0 0.0
      %727 = vmatprep.subr.mxu0 0.0
      %728 = vmatpush1.msra.mxu0 0.0
      %729 = vmatprep.subr.mxu0 0.0
      %730 = vmatpush1.msra.mxu0 0.0
      %731 = vmatprep.subr.mxu0 0.0
      %732 = vmatpush1.msra.mxu0 0.0
      %733 = vmatprep.subr.mxu0 0.0
      %734 = vmatpush1.msra.mxu0 0.0
      %735 = vmatprep.subr.mxu0 0.0
      %736 = vmatpush1.msra.mxu0 0.0
      %737 = vmatprep.subr.mxu0 0.0
      %738 = vmatpush1.msra.mxu0 0.0
      %739 = vmatprep.subr.mxu0 0.0
      %740 = vmatpush1.msra.mxu0 0.0
      %741 = vmatprep.subr.mxu0 0.0
      %742 = vmatpush1.msra.mxu0 0.0
      %743 = vmatprep.subr.mxu0 0.0
      %744 = vmatpush1.msra.mxu0 0.0
      %745 = vmatprep.subr.mxu0 0.0
      %746 = vmatpush1.msra.mxu0 0.0
      %747 = vmatprep.subr.mxu0 0.0
      %748 = vmatpush1.msra.mxu0 0.0
      %749 = vmatprep.subr.mxu0 0.0
      %750 = vmatpush1.msra.mxu0 0.0
      %751 = vmatprep.subr.mxu0 0.0
      %752 = vmatpush1.msra.mxu0 0.0
      %753 = vmatprep.subr.mxu0 0.0
      %754 = vmatpush1.msra.mxu0 0.0
      %755 = vmatprep.subr.mxu0 0.0
      %756 = vmatpush1.msra.mxu0 0.0
      %757 = vmatprep.subr.mxu0 0.0
      %758 = vmatpush1.msra.mxu0 0.0
      %759 = vmatprep.subr.mxu0 0.0
      %760 = vmatpush1.msra.mxu0 0.0
      %761 = vmatprep.subr.mxu0 0.0
      %762 = vmatpush1.msra.mxu0 0.0
      %763 = vmatprep.subr.mxu0 0.0
      %764 = vmatpush1.msra.mxu0 0.0
      %765 = vmatprep.mubr.f32.mxu0 0.0
      %766 = vmatmul.mubr.f32.gmra.mrb[0].mxu0 %v379
      %v767 = vpop.f32.mrb[0].mxu0
      %v768 = vadd.f32 %v541, %v767
      %v769 = vpop.f32.mrb[0].mxu0
      %770 = vmatprep.mubr.f32.mxu0 0.0
      %771 = vmatmul.mubr.f32.gmra.mrb[0].mxu0 %v382
      %v772 = vpop.f32.mrb[0].mxu0
      %v773 = vadd.f32 %v546, %v772
      %v774 = vpop.f32.mrb[0].mxu0
      %775 = vmatprep.mubr.f32.mxu0 0.0
      %776 = vmatmul.mubr.f32.gmra.mrb[0].mxu0 %v385
      %v777 = vpop.f32.mrb[0].mxu0
      %v778 = vadd.f32 %v551, %v777
      %v779 = vpop.f32.mrb[0].mxu0
      %780 = vmatprep.mubr.f32.mxu0 0.0
      %781 = vmatmul.mubr.f32.gmra.mrb[0].mxu0 %v388
      %v782 = vpop.f32.mrb[0].mxu0
      %v783 = vadd.f32 %v556, %v782
      %v784 = vpop.f32.mrb[0].mxu0
      %785 = vmatprep.mubr.f32.mxu0 0.0
      %786 = vmatmul.mubr.f32.gmra.mrb[0].mxu0 %v391
      %v787 = vpop.f32.mrb[0].mxu0
      %v788 = vadd.f32 %v561, %v787
      %v789 = vpop.f32.mrb[0].mxu0
      %790 = vmatprep.mubr.f32.mxu0 0.0
      %791 = vmatmul.mubr.f32.gmra.mrb[0].mxu0 %v394
      %v792 = vpop.f32.mrb[0].mxu0
      %v793 = vadd.f32 %v566, %v792
      %v794 = vpop.f32.mrb[0].mxu0
      %795 = vmatprep.mubr.f32.mxu0 0.0
      %796 = vmatmul.mubr.f32.gmra.mrb[0].mxu0 %v397
      %v797 = vpop.f32.mrb[0].mxu0
      %v798 = vadd.f32 %v571, %v797
      %v799 = vpop.f32.mrb[0].mxu0
      %800 = vmatprep.mubr.f32.mxu0 0.0
      %801 = vmatmul.mubr.f32.gmra.mrb[0].mxu0 %v400
      %v802 = vpop.f32.mrb[0].mxu0
      %v803 = vadd.f32 %v576, %v802
      %v804 = vpop.f32.mrb[0].mxu0
      %805 = vmatprep.mubr.f32.mxu0 0.0
      %806 = vmatmul.mubr.f32.gmra.mrb[0].mxu0 %v403
      %v807 = vpop.f32.mrb[0].mxu0
      %v808 = vadd.f32 %v581, %v807
      %v809 = vpop.f32.mrb[0].mxu0
      %810 = vmatprep.mubr.f32.mxu0 0.0
      %811 = vmatmul.mubr.f32.gmra.mrb[0].mxu0 %v406
      %v812 = vpop.f32.mrb[0].mxu0
      %v813 = vadd.f32 %v586, %v812
      %v814 = vpop.f32.mrb[0].mxu0
      %815 = vmatprep.mubr.f32.mxu0 0.0
      %816 = vmatmul.mubr.f32.gmra.mrb[0].mxu0 %v409
      %v817 = vpop.f32.mrb[0].mxu0
      %v818 = vadd.f32 %v591, %v817
      %v819 = vpop.f32.mrb[0].mxu0
      %820 = vmatprep.mubr.f32.mxu0 0.0
      %821 = vmatmul.mubr.f32.gmra.mrb[0].mxu0 %v412
      %v822 = vpop.f32.mrb[0].mxu0
      %v823 = vadd.f32 %v596, %v822
      %v824 = vpop.f32.mrb[0].mxu0
      %825 = vmatprep.mubr.f32.mxu0 0.0
      %826 = vmatmul.mubr.f32.gmra.mrb[0].mxu0 %v415
      %v827 = vpop.f32.mrb[0].mxu0
      %v828 = vadd.f32 %v601, %v827
      %v829 = vpop.f32.mrb[0].mxu0
      %830 = vmatprep.mubr.f32.mxu0 0.0
      %831 = vmatmul.mubr.f32.gmra.mrb[0].mxu0 %v418
      %v832 = vpop.f32.mrb[0].mxu0
      %v833 = vadd.f32 %v606, %v832
      %v834 = vpop.f32.mrb[0].mxu0
      %835 = vmatprep.mubr.f32.mxu0 0.0
      %836 = vmatmul.mubr.f32.gmra.mrb[0].mxu0 %v421
      %v837 = vpop.f32.mrb[0].mxu0
      %v838 = vadd.f32 %v611, %v837
      %v839 = vpop.f32.mrb[0].mxu0
      %840 = vmatprep.mubr.f32.mxu0 0.0
      %841 = vmatmul.mubr.f32.gmra.mrb[0].mxu0 %v424
      %v842 = vpop.f32.mrb[0].mxu0
      %v843 = vadd.f32 %v616, %v842
      %v844 = vpop.f32.mrb[0].mxu0
      %845 = vmatprep.mubr.f32.mxu0 0.0
      %846 = vmatmul.mubr.f32.gmra.mrb[0].mxu0 %v427
      %v847 = vpop.f32.mrb[0].mxu0
      %v848 = vadd.f32 %v621, %v847
      %v849 = vpop.f32.mrb[0].mxu0
      %850 = vmatprep.mubr.f32.mxu0 0.0
      %851 = vmatmul.mubr.f32.gmra.mrb[0].mxu0 %v430
      %v852 = vpop.f32.mrb[0].mxu0
      %v853 = vadd.f32 %v626, %v852
      %v854 = vpop.f32.mrb[0].mxu0
      %855 = vmatprep.mubr.f32.mxu0 0.0
      %856 = vmatmul.mubr.f32.gmra.mrb[0].mxu0 %v433
      %v857 = vpop.f32.mrb[0].mxu0
      %v858 = vadd.f32 %v631, %v857
      %v859 = vpop.f32.mrb[0].mxu0
      %860 = vmatprep.mubr.f32.mxu0 0.0
      %861 = vmatmul.mubr.f32.gmra.mrb[0].mxu0 %v436
      %v862 = vpop.f32.mrb[0].mxu0
      %v863 = vadd.f32 %v636, %v862
      %v864 = vpop.f32.mrb[0].mxu0
      %865 = vmatprep.mubr.f32.mxu0 0.0
      %866 = vmatmul.mubr.f32.gmra.mrb[0].mxu0 %v439
      %v867 = vpop.f32.mrb[0].mxu0
      %v868 = vadd.f32 %v641, %v867
      %v869 = vpop.f32.mrb[0].mxu0
      %870 = vmatprep.mubr.f32.mxu0 0.0
      %871 = vmatmul.mubr.f32.gmra.mrb[0].mxu0 %v442
      %v872 = vpop.f32.mrb[0].mxu0
      %v873 = vadd.f32 %v646, %v872
      %v874 = vpop.f32.mrb[0].mxu0
      %875 = vmatprep.mubr.f32.mxu0 0.0
      %876 = vmatmul.mubr.f32.gmra.mrb[0].mxu0 %v445
      %v877 = vpop.f32.mrb[0].mxu0
      %v878 = vadd.f32 %v651, %v877
      %v879 = vpop.f32.mrb[0].mxu0
      %880 = vmatprep.mubr.f32.mxu0 0.0
      %881 = vmatmul.mubr.f32.gmra.mrb[0].mxu0 %v448
      %v882 = vpop.f32.mrb[0].mxu0
      %v883 = vadd.f32 %v656, %v882
      %v884 = vpop.f32.mrb[0].mxu0
      %885 = vmatprep.mubr.f32.mxu0 0.0
      %886 = vmatmul.mubr.f32.gmra.mrb[0].mxu0 %v451
      %v887 = vpop.f32.mrb[0].mxu0
      %v888 = vadd.f32 %v661, %v887
      %v889 = vpop.f32.mrb[0].mxu0
      %890 = vmatprep.mubr.f32.mxu0 0.0
      %891 = vmatmul.mubr.f32.gmra.mrb[0].mxu0 %v454
      %v892 = vpop.f32.mrb[0].mxu0
      %v893 = vadd.f32 %v666, %v892
      %v894 = vpop.f32.mrb[0].mxu0
      %895 = vmatprep.mubr.f32.mxu0 0.0
      %896 = vmatmul.mubr.f32.gmra.mrb[0].mxu0 %v457
      %v897 = vpop.f32.mrb[0].mxu0
      %v898 = vadd.f32 %v671, %v897
      %v899 = vpop.f32.mrb[0].mxu0
      %900 = vmatprep.mubr.f32.mxu0 0.0
      %901 = vmatmul.mubr.f32.gmra.mrb[0].mxu0 %v460
      %v902 = vpop.f32.mrb[0].mxu0
      %v903 = vadd.f32 %v676, %v902
      %v904 = vpop.f32.mrb[0].mxu0
      %905 = vmatprep.mubr.f32.mxu0 0.0
      %906 = vmatmul.mubr.f32.gmra.mrb[0].mxu0 %v463
      %v907 = vpop.f32.mrb[0].mxu0
      %v908 = vadd.f32 %v681, %v907
      %v909 = vpop.f32.mrb[0].mxu0
      %910 = vmatprep.mubr.f32.mxu0 0.0
      %911 = vmatmul.mubr.f32.gmra.mrb[0].mxu0 %v466
      %v912 = vpop.f32.mrb[0].mxu0
      %v913 = vadd.f32 %v686, %v912
      %v914 = vpop.f32.mrb[0].mxu0
      %915 = vmatprep.mubr.f32.mxu0 0.0
      %916 = vmatmul.mubr.f32.gmra.mrb[0].mxu0 %v469
      %v917 = vpop.f32.mrb[0].mxu0
      %v918 = vadd.f32 %v691, %v917
      %v919 = vpop.f32.mrb[0].mxu0
      %920 = vmatprep.mubr.f32.mxu0 0.0
      %921 = vmatmul.mubr.f32.gmra.mrb[0].mxu0 %v472
      %v922 = vpop.f32.mrb[0].mxu0
      %v923 = vadd.f32 %v696, %v922
      %v924 = vpop.f32.mrb[0].mxu0
      %925 = vdwg.mxu0
      %v926 = vld [vmem:[%s5] sm:$0x1]
      %v928 = vlaneseq
      %v929 = vshrl.u32 %v928, 7
      %v930 = vsub.s32 0, %v929
      %v931 = vrot.slane %v926, %v930
      %v933 = vmul.f32 %v768, %v931
      %v934 = vmul.f32 %v773, %v931
      %v935 = vmul.f32 %v778, %v931
      %v936 = vmul.f32 %v783, %v931
      %v937 = vmul.f32 %v788, %v931
      %v938 = vmul.f32 %v793, %v931
      %v939 = vmul.f32 %v798, %v931
      %v940 = vmul.f32 %v803, %v931
      %v941 = vmul.f32 %v808, %v931
      %v942 = vmul.f32 %v813, %v931
      %v943 = vmul.f32 %v818, %v931
      %v944 = vmul.f32 %v823, %v931
      %v945 = vmul.f32 %v828, %v931
      %v946 = vmul.f32 %v833, %v931
      %v947 = vmul.f32 %v838, %v931
      %v948 = vmul.f32 %v843, %v931
      %v949 = vmul.f32 %v848, %v931
      %v950 = vmul.f32 %v853, %v931
      %v951 = vmul.f32 %v858, %v931
      %v952 = vmul.f32 %v863, %v931
      %v953 = vmul.f32 %v868, %v931
      %v954 = vmul.f32 %v873, %v931
      %v955 = vmul.f32 %v878, %v931
      %v956 = vmul.f32 %v883, %v931
      %v957 = vmul.f32 %v888, %v931
      %v958 = vmul.f32 %v893, %v931
      %v959 = vmul.f32 %v898, %v931
      %v960 = vmul.f32 %v903, %v931
      %v961 = vmul.f32 %v908, %v931
      %v962 = vmul.f32 %v913, %v931
      %v963 = vmul.f32 %v918, %v931
      %v964 = vmul.f32 %v923, %v931
      %v965 = vld [vmem:[%s6] sm:$0x1]
      %v967 = vlaneseq
      %v968 = vshrl.u32 %v967, 7
      %v969 = vsub.s32 0, %v968
      %v970 = vrot.slane %v965, %v969
      %v972 = vadd.f32 %v933, %v970
      %v973 = vadd.f32 %v934, %v970
      %v974 = vadd.f32 %v935, %v970
      %v975 = vadd.f32 %v936, %v970
      %v976 = vadd.f32 %v937, %v970
      %v977 = vadd.f32 %v938, %v970
      %v978 = vadd.f32 %v939, %v970
      %v979 = vadd.f32 %v940, %v970
      %v980 = vadd.f32 %v941, %v970
      %v981 = vadd.f32 %v942, %v970
      %v982 = vadd.f32 %v943, %v970
      %v983 = vadd.f32 %v944, %v970
      %v984 = vadd.f32 %v945, %v970
      %v985 = vadd.f32 %v946, %v970
      %v986 = vadd.f32 %v947, %v970
      %v987 = vadd.f32 %v948, %v970
      %v988 = vadd.f32 %v949, %v970
      %v989 = vadd.f32 %v950, %v970
      %v990 = vadd.f32 %v951, %v970
      %v991 = vadd.f32 %v952, %v970
      %v992 = vadd.f32 %v953, %v970
      %v993 = vadd.f32 %v954, %v970
      %v994 = vadd.f32 %v955, %v970
      %v995 = vadd.f32 %v956, %v970
      %v996 = vadd.f32 %v957, %v970
      %v997 = vadd.f32 %v958, %v970
      %v998 = vadd.f32 %v959, %v970
      %v999 = vadd.f32 %v960, %v970
      %v1000 = vadd.f32 %v961, %v970
      %v1001 = vadd.f32 %v962, %v970
      %v1002 = vadd.f32 %v963, %v970
      %v1003 = vadd.f32 %v964, %v970
      %v1004 = vmax.f32 %v972, 0.0
      %v1005 = vmax.f32 %v973, 0.0
      %v1006 = vmax.f32 %v974, 0.0
      %v1007 = vmax.f32 %v975, 0.0
      %v1008 = vmax.f32 %v976, 0.0
      %v1009 = vmax.f32 %v977, 0.0
      %v1010 = vmax.f32 %v978, 0.0
      %v1011 = vmax.f32 %v979, 0.0
      %v1012 = vmax.f32 %v980, 0.0
      %v1013 = vmax.f32 %v981, 0.0
      %v1014 = vmax.f32 %v982, 0.0
      %v1015 = vmax.f32 %v983, 0.0
      %v1016 = vmax.f32 %v984, 0.0
      %v1017 = vmax.f32 %v985, 0.0
      %v1018 = vmax.f32 %v986, 0.0
      %v1019 = vmax.f32 %v987, 0.0
      %v1020 = vmax.f32 %v988, 0.0
      %v1021 = vmax.f32 %v989, 0.0
      %v1022 = vmax.f32 %v990, 0.0
      %v1023 = vmax.f32 %v991, 0.0
      %v1024 = vmax.f32 %v992, 0.0
      %v1025 = vmax.f32 %v993, 0.0
      %v1026 = vmax.f32 %v994, 0.0
      %v1027 = vmax.f32 %v995, 0.0
      %v1028 = vmax.f32 %v996, 0.0
      %v1029 = vmax.f32 %v997, 0.0
      %v1030 = vmax.f32 %v998, 0.0
      %v1031 = vmax.f32 %v999, 0.0
      %v1032 = vmax.f32 %v1000, 0.0
      %v1033 = vmax.f32 %v1001, 0.0
      %v1034 = vmax.f32 %v1002, 0.0
      %v1035 = vmax.f32 %v1003, 0.0
      %v1036 = vld [vmem:[%s4] sm:$0xff]
      %v1037 = vld [vmem:[%s4 + $0x8] sm:$0xff]
      %v1038 = vld [vmem:[%s4 + $0x10] sm:$0xff]
      %v1039 = vld [vmem:[%s4 + $0x18] sm:$0xff]
      %vm1040 = vcmask 261120
      %v1042 = vsel %vm1040, %v1004, 0
      %v1045 = vsel %vm1040, %v1005, 0
      %v1048 = vsel %vm1040, %v1006, 0
      %v1051 = vsel %vm1040, %v1007, 0
      %v1054 = vsel %vm1040, %v1008, 0
      %v1057 = vsel %vm1040, %v1009, 0
      %v1060 = vsel %vm1040, %v1010, 0
      %v1063 = vsel %vm1040, %v1011, 0
      %v1066 = vsel %vm1040, %v1012, 0
      %v1069 = vsel %vm1040, %v1013, 0
      %v1072 = vsel %vm1040, %v1014, 0
      %v1075 = vsel %vm1040, %v1015, 0
      %v1078 = vsel %vm1040, %v1016, 0
      %v1081 = vsel %vm1040, %v1017, 0
      %v1084 = vsel %vm1040, %v1018, 0
      %v1087 = vsel %vm1040, %v1019, 0
      %v1090 = vsel %vm1040, %v1020, 0
      %v1093 = vsel %vm1040, %v1021, 0
      %v1096 = vsel %vm1040, %v1022, 0
      %v1099 = vsel %vm1040, %v1023, 0
      %v1102 = vsel %vm1040, %v1024, 0
      %v1105 = vsel %vm1040, %v1025, 0
      %v1108 = vsel %vm1040, %v1026, 0
      %v1111 = vsel %vm1040, %v1027, 0
      %v1114 = vsel %vm1040, %v1028, 0
      %v1117 = vsel %vm1040, %v1029, 0
      %v1120 = vsel %vm1040, %v1030, 0
      %v1123 = vsel %vm1040, %v1031, 0
      %v1126 = vsel %vm1040, %v1032, 0
      %v1129 = vsel %vm1040, %v1033, 0
      %v1132 = vsel %vm1040, %v1034, 0
      %v1135 = vsel %vm1040, %v1035, 0
      %1137 = vmatprep.subr.mxu0 0.0
      %1138 = vmatpush1.msra.mxu0 %v1036
      %1139 = vmatprep.subr.mxu0 0.0
      %1140 = vmatpush1.msra.mxu0 %v1037
      %1141 = vmatprep.subr.mxu0 0.0
      %1142 = vmatpush1.msra.mxu0 %v1038
      %1143 = vmatprep.subr.mxu0 0.0
      %1144 = vmatpush1.msra.mxu0 %v1039
      %1145 = vmatprep.subr.mxu0 0.0
      %1146 = vmatpush1.msra.mxu0 0.0
      %1147 = vmatprep.subr.mxu0 0.0
      %1148 = vmatpush1.msra.mxu0 0.0
      %1149 = vmatprep.subr.mxu0 0.0
      %1150 = vmatpush1.msra.mxu0 0.0
      %1151 = vmatprep.subr.mxu0 0.0
      %1152 = vmatpush1.msra.mxu0 0.0
      %1153 = vmatprep.subr.mxu0 0.0
      %1154 = vmatpush1.msra.mxu0 0.0
      %1155 = vmatprep.subr.mxu0 0.0
      %1156 = vmatpush1.msra.mxu0 0.0
      %1157 = vmatprep.subr.mxu0 0.0
      %1158 = vmatpush1.msra.mxu0 0.0
      %1159 = vmatprep.subr.mxu0 0.0
      %1160 = vmatpush1.msra.mxu0 0.0
      %1161 = vmatprep.subr.mxu0 0.0
      %1162 = vmatpush1.msra.mxu0 0.0
      %1163 = vmatprep.subr.mxu0 0.0
      %1164 = vmatpush1.msra.mxu0 0.0
      %1165 = vmatprep.subr.mxu0 0.0
      %1166 = vmatpush1.msra.mxu0 0.0
      %1167 = vmatprep.subr.mxu0 0.0
      %1168 = vmatpush1.msra.mxu0 0.0
      %1169 = vmatprep.subr.mxu0 0.0
      %1170 = vmatpush1.msra.mxu0 0.0
      %1171 = vmatprep.subr.mxu0 0.0
      %1172 = vmatpush1.msra.mxu0 0.0
      %1173 = vmatprep.subr.mxu0 0.0
      %1174 = vmatpush1.msra.mxu0 0.0
      %1175 = vmatprep.subr.mxu0 0.0
      %1176 = vmatpush1.msra.mxu0 0.0
      %1177 = vmatprep.subr.mxu0 0.0
      %1178 = vmatpush1.msra.mxu0 0.0
      %1179 = vmatprep.subr.mxu0 0.0
      %1180 = vmatpush1.msra.mxu0 0.0
      %1181 = vmatprep.subr.mxu0 0.0
      %1182 = vmatpush1.msra.mxu0 0.0
      %1183 = vmatprep.subr.mxu0 0.0
      %1184 = vmatpush1.msra.mxu0 0.0
      %1185 = vmatprep.subr.mxu0 0.0
      %1186 = vmatpush1.msra.mxu0 0.0
      %1187 = vmatprep.subr.mxu0 0.0
      %1188 = vmatpush1.msra.mxu0 0.0
      %1189 = vmatprep.subr.mxu0 0.0
      %1190 = vmatpush1.msra.mxu0 0.0
      %1191 = vmatprep.subr.mxu0 0.0
      %1192 = vmatpush1.msra.mxu0 0.0
      %1193 = vmatprep.subr.mxu0 0.0
      %1194 = vmatpush1.msra.mxu0 0.0
      %1195 = vmatprep.subr.mxu0 0.0
      %1196 = vmatpush1.msra.mxu0 0.0
      %1197 = vmatprep.subr.mxu0 0.0
      %1198 = vmatpush1.msra.mxu0 0.0
      %1199 = vmatprep.subr.mxu0 0.0
      %1200 = vmatpush1.msra.mxu0 0.0
      %1201 = vmatprep.mubr.f32.mxu0 0.0
      %1202 = vmatmul.mubr.f32.gmra.mrb[0].mxu0 %v1042
      %v1203 = vpop.f32.mrb[0].mxu0
      %v1204 = vadd.f32 %v1004, %v1203
      %v1205 = vpop.f32.mrb[0].mxu0
      %1206 = vmatprep.mubr.f32.mxu0 0.0
      %1207 = vmatmul.mubr.f32.gmra.mrb[0].mxu0 %v1045
      %v1208 = vpop.f32.mrb[0].mxu0
      %v1209 = vadd.f32 %v1005, %v1208
      %v1210 = vpop.f32.mrb[0].mxu0
      %1211 = vmatprep.mubr.f32.mxu0 0.0
      %1212 = vmatmul.mubr.f32.gmra.mrb[0].mxu0 %v1048
      %v1213 = vpop.f32.mrb[0].mxu0
      %v1214 = vadd.f32 %v1006, %v1213
      %v1215 = vpop.f32.mrb[0].mxu0
      %1216 = vmatprep.mubr.f32.mxu0 0.0
      %1217 = vmatmul.mubr.f32.gmra.mrb[0].mxu0 %v1051
      %v1218 = vpop.f32.mrb[0].mxu0
      %v1219 = vadd.f32 %v1007, %v1218
      %v1220 = vpop.f32.mrb[0].mxu0
      %1221 = vmatprep.mubr.f32.mxu0 0.0
      %1222 = vmatmul.mubr.f32.gmra.mrb[0].mxu0 %v1054
      %v1223 = vpop.f32.mrb[0].mxu0
      %v1224 = vadd.f32 %v1008, %v1223
      %v1225 = vpop.f32.mrb[0].mxu0
      %1226 = vmatprep.mubr.f32.mxu0 0.0
      %1227 = vmatmul.mubr.f32.gmra.mrb[0].mxu0 %v1057
      %v1228 = vpop.f32.mrb[0].mxu0
      %v1229 = vadd.f32 %v1009, %v1228
      %v1230 = vpop.f32.mrb[0].mxu0
      %1231 = vmatprep.mubr.f32.mxu0 0.0
      %1232 = vmatmul.mubr.f32.gmra.mrb[0].mxu0 %v1060
      %v1233 = vpop.f32.mrb[0].mxu0
      %v1234 = vadd.f32 %v1010, %v1233
      %v1235 = vpop.f32.mrb[0].mxu0
      %1236 = vmatprep.mubr.f32.mxu0 0.0
      %1237 = vmatmul.mubr.f32.gmra.mrb[0].mxu0 %v1063
      %v1238 = vpop.f32.mrb[0].mxu0
      %v1239 = vadd.f32 %v1011, %v1238
      %v1240 = vpop.f32.mrb[0].mxu0
      %1241 = vmatprep.mubr.f32.mxu0 0.0
      %1242 = vmatmul.mubr.f32.gmra.mrb[0].mxu0 %v1066
      %v1243 = vpop.f32.mrb[0].mxu0
      %v1244 = vadd.f32 %v1012, %v1243
      %v1245 = vpop.f32.mrb[0].mxu0
      %1246 = vmatprep.mubr.f32.mxu0 0.0
      %1247 = vmatmul.mubr.f32.gmra.mrb[0].mxu0 %v1069
      %v1248 = vpop.f32.mrb[0].mxu0
      %v1249 = vadd.f32 %v1013, %v1248
      %v1250 = vpop.f32.mrb[0].mxu0
      %1251 = vmatprep.mubr.f32.mxu0 0.0
      %1252 = vmatmul.mubr.f32.gmra.mrb[0].mxu0 %v1072
      %v1253 = vpop.f32.mrb[0].mxu0
      %v1254 = vadd.f32 %v1014, %v1253
      %v1255 = vpop.f32.mrb[0].mxu0
      %1256 = vmatprep.mubr.f32.mxu0 0.0
      %1257 = vmatmul.mubr.f32.gmra.mrb[0].mxu0 %v1075
      %v1258 = vpop.f32.mrb[0].mxu0
      %v1259 = vadd.f32 %v1015, %v1258
      %v1260 = vpop.f32.mrb[0].mxu0
      %1261 = vmatprep.mubr.f32.mxu0 0.0
      %1262 = vmatmul.mubr.f32.gmra.mrb[0].mxu0 %v1078
      %v1263 = vpop.f32.mrb[0].mxu0
      %v1264 = vadd.f32 %v1016, %v1263
      %v1265 = vpop.f32.mrb[0].mxu0
      %1266 = vmatprep.mubr.f32.mxu0 0.0
      %1267 = vmatmul.mubr.f32.gmra.mrb[0].mxu0 %v1081
      %v1268 = vpop.f32.mrb[0].mxu0
      %v1269 = vadd.f32 %v1017, %v1268
      %v1270 = vpop.f32.mrb[0].mxu0
      %1271 = vmatprep.mubr.f32.mxu0 0.0
      %1272 = vmatmul.mubr.f32.gmra.mrb[0].mxu0 %v1084
      %v1273 = vpop.f32.mrb[0].mxu0
      %v1274 = vadd.f32 %v1018, %v1273
      %v1275 = vpop.f32.mrb[0].mxu0
      %1276 = vmatprep.mubr.f32.mxu0 0.0
      %1277 = vmatmul.mubr.f32.gmra.mrb[0].mxu0 %v1087
      %v1278 = vpop.f32.mrb[0].mxu0
      %v1279 = vadd.f32 %v1019, %v1278
      %v1280 = vpop.f32.mrb[0].mxu0
      %1281 = vmatprep.mubr.f32.mxu0 0.0
      %1282 = vmatmul.mubr.f32.gmra.mrb[0].mxu0 %v1090
      %v1283 = vpop.f32.mrb[0].mxu0
      %v1284 = vadd.f32 %v1020, %v1283
      %v1285 = vpop.f32.mrb[0].mxu0
      %1286 = vmatprep.mubr.f32.mxu0 0.0
      %1287 = vmatmul.mubr.f32.gmra.mrb[0].mxu0 %v1093
      %v1288 = vpop.f32.mrb[0].mxu0
      %v1289 = vadd.f32 %v1021, %v1288
      %v1290 = vpop.f32.mrb[0].mxu0
      %1291 = vmatprep.mubr.f32.mxu0 0.0
      %1292 = vmatmul.mubr.f32.gmra.mrb[0].mxu0 %v1096
      %v1293 = vpop.f32.mrb[0].mxu0
      %v1294 = vadd.f32 %v1022, %v1293
      %v1295 = vpop.f32.mrb[0].mxu0
      %1296 = vmatprep.mubr.f32.mxu0 0.0
      %1297 = vmatmul.mubr.f32.gmra.mrb[0].mxu0 %v1099
      %v1298 = vpop.f32.mrb[0].mxu0
      %v1299 = vadd.f32 %v1023, %v1298
      %v1300 = vpop.f32.mrb[0].mxu0
      %1301 = vmatprep.mubr.f32.mxu0 0.0
      %1302 = vmatmul.mubr.f32.gmra.mrb[0].mxu0 %v1102
      %v1303 = vpop.f32.mrb[0].mxu0
      %v1304 = vadd.f32 %v1024, %v1303
      %v1305 = vpop.f32.mrb[0].mxu0
      %1306 = vmatprep.mubr.f32.mxu0 0.0
      %1307 = vmatmul.mubr.f32.gmra.mrb[0].mxu0 %v1105
      %v1308 = vpop.f32.mrb[0].mxu0
      %v1309 = vadd.f32 %v1025, %v1308
      %v1310 = vpop.f32.mrb[0].mxu0
      %1311 = vmatprep.mubr.f32.mxu0 0.0
      %1312 = vmatmul.mubr.f32.gmra.mrb[0].mxu0 %v1108
      %v1313 = vpop.f32.mrb[0].mxu0
      %v1314 = vadd.f32 %v1026, %v1313
      %v1315 = vpop.f32.mrb[0].mxu0
      %1316 = vmatprep.mubr.f32.mxu0 0.0
      %1317 = vmatmul.mubr.f32.gmra.mrb[0].mxu0 %v1111
      %v1318 = vpop.f32.mrb[0].mxu0
      %v1319 = vadd.f32 %v1027, %v1318
      %v1320 = vpop.f32.mrb[0].mxu0
      %1321 = vmatprep.mubr.f32.mxu0 0.0
      %1322 = vmatmul.mubr.f32.gmra.mrb[0].mxu0 %v1114
      %v1323 = vpop.f32.mrb[0].mxu0
      %v1324 = vadd.f32 %v1028, %v1323
      %v1325 = vpop.f32.mrb[0].mxu0
      %1326 = vmatprep.mubr.f32.mxu0 0.0
      %1327 = vmatmul.mubr.f32.gmra.mrb[0].mxu0 %v1117
      %v1328 = vpop.f32.mrb[0].mxu0
      %v1329 = vadd.f32 %v1029, %v1328
      %v1330 = vpop.f32.mrb[0].mxu0
      %1331 = vmatprep.mubr.f32.mxu0 0.0
      %1332 = vmatmul.mubr.f32.gmra.mrb[0].mxu0 %v1120
      %v1333 = vpop.f32.mrb[0].mxu0
      %v1334 = vadd.f32 %v1030, %v1333
      %v1335 = vpop.f32.mrb[0].mxu0
      %1336 = vmatprep.mubr.f32.mxu0 0.0
      %1337 = vmatmul.mubr.f32.gmra.mrb[0].mxu0 %v1123
      %v1338 = vpop.f32.mrb[0].mxu0
      %v1339 = vadd.f32 %v1031, %v1338
      %v1340 = vpop.f32.mrb[0].mxu0
      %1341 = vmatprep.mubr.f32.mxu0 0.0
      %1342 = vmatmul.mubr.f32.gmra.mrb[0].mxu0 %v1126
      %v1343 = vpop.f32.mrb[0].mxu0
      %v1344 = vadd.f32 %v1032, %v1343
      %v1345 = vpop.f32.mrb[0].mxu0
      %1346 = vmatprep.mubr.f32.mxu0 0.0
      %1347 = vmatmul.mubr.f32.gmra.mrb[0].mxu0 %v1129
      %v1348 = vpop.f32.mrb[0].mxu0
      %v1349 = vadd.f32 %v1033, %v1348
      %v1350 = vpop.f32.mrb[0].mxu0
      %1351 = vmatprep.mubr.f32.mxu0 0.0
      %1352 = vmatmul.mubr.f32.gmra.mrb[0].mxu0 %v1132
      %v1353 = vpop.f32.mrb[0].mxu0
      %v1354 = vadd.f32 %v1034, %v1353
      %v1355 = vpop.f32.mrb[0].mxu0
      %1356 = vmatprep.mubr.f32.mxu0 0.0
      %1357 = vmatmul.mubr.f32.gmra.mrb[0].mxu0 %v1135
      %v1358 = vpop.f32.mrb[0].mxu0
      %v1359 = vadd.f32 %v1035, %v1358
      %v1360 = vpop.f32.mrb[0].mxu0
      %1361 = vdwg.mxu0
      %s1362 = scalar_lea.vmem %s5, 1
      %v1363 = vld [vmem:[%s1362] sm:$0x1]
      %v1365 = vlaneseq
      %v1366 = vshrl.u32 %v1365, 7
      %v1367 = vsub.s32 0, %v1366
      %v1368 = vrot.slane %v1363, %v1367
      %v1370 = vmul.f32 %v1204, %v1368
      %v1371 = vmul.f32 %v1209, %v1368
      %v1372 = vmul.f32 %v1214, %v1368
      %v1373 = vmul.f32 %v1219, %v1368
      %v1374 = vmul.f32 %v1224, %v1368
      %v1375 = vmul.f32 %v1229, %v1368
      %v1376 = vmul.f32 %v1234, %v1368
      %v1377 = vmul.f32 %v1239, %v1368
      %v1378 = vmul.f32 %v1244, %v1368
      %v1379 = vmul.f32 %v1249, %v1368
      %v1380 = vmul.f32 %v1254, %v1368
      %v1381 = vmul.f32 %v1259, %v1368
      %v1382 = vmul.f32 %v1264, %v1368
      %v1383 = vmul.f32 %v1269, %v1368
      %v1384 = vmul.f32 %v1274, %v1368
      %v1385 = vmul.f32 %v1279, %v1368
      %v1386 = vmul.f32 %v1284, %v1368
      %v1387 = vmul.f32 %v1289, %v1368
      %v1388 = vmul.f32 %v1294, %v1368
      %v1389 = vmul.f32 %v1299, %v1368
      %v1390 = vmul.f32 %v1304, %v1368
      %v1391 = vmul.f32 %v1309, %v1368
      %v1392 = vmul.f32 %v1314, %v1368
      %v1393 = vmul.f32 %v1319, %v1368
      %v1394 = vmul.f32 %v1324, %v1368
      %v1395 = vmul.f32 %v1329, %v1368
      %v1396 = vmul.f32 %v1334, %v1368
      %v1397 = vmul.f32 %v1339, %v1368
      %v1398 = vmul.f32 %v1344, %v1368
      %v1399 = vmul.f32 %v1349, %v1368
      %v1400 = vmul.f32 %v1354, %v1368
      %v1401 = vmul.f32 %v1359, %v1368
      %s1402 = scalar_lea.vmem %s6, 1
      %v1403 = vld [vmem:[%s1402] sm:$0x1]
      %v1405 = vlaneseq
      %v1406 = vshrl.u32 %v1405, 7
      %v1407 = vsub.s32 0, %v1406
      %v1408 = vrot.slane %v1403, %v1407
      %v1410 = vadd.f32 %v1370, %v1408
      %v1411 = vadd.f32 %v1371, %v1408
      %v1412 = vadd.f32 %v1372, %v1408
      %v1413 = vadd.f32 %v1373, %v1408
      %v1414 = vadd.f32 %v1374, %v1408
      %v1415 = vadd.f32 %v1375, %v1408
      %v1416 = vadd.f32 %v1376, %v1408
      %v1417 = vadd.f32 %v1377, %v1408
      %v1418 = vadd.f32 %v1378, %v1408
      %v1419 = vadd.f32 %v1379, %v1408
      %v1420 = vadd.f32 %v1380, %v1408
      %v1421 = vadd.f32 %v1381, %v1408
      %v1422 = vadd.f32 %v1382, %v1408
      %v1423 = vadd.f32 %v1383, %v1408
      %v1424 = vadd.f32 %v1384, %v1408
      %v1425 = vadd.f32 %v1385, %v1408
      %v1426 = vadd.f32 %v1386, %v1408
      %v1427 = vadd.f32 %v1387, %v1408
      %v1428 = vadd.f32 %v1388, %v1408
      %v1429 = vadd.f32 %v1389, %v1408
      %v1430 = vadd.f32 %v1390, %v1408
      %v1431 = vadd.f32 %v1391, %v1408
      %v1432 = vadd.f32 %v1392, %v1408
      %v1433 = vadd.f32 %v1393, %v1408
      %v1434 = vadd.f32 %v1394, %v1408
      %v1435 = vadd.f32 %v1395, %v1408
      %v1436 = vadd.f32 %v1396, %v1408
      %v1437 = vadd.f32 %v1397, %v1408
      %v1438 = vadd.f32 %v1398, %v1408
      %v1439 = vadd.f32 %v1399, %v1408
      %v1440 = vadd.f32 %v1400, %v1408
      %v1441 = vadd.f32 %v1401, %v1408
      %v1442 = vmax.f32 %v1410, 0.0
      %v1443 = vmax.f32 %v1411, 0.0
      %v1444 = vmax.f32 %v1412, 0.0
      %v1445 = vmax.f32 %v1413, 0.0
      %v1446 = vmax.f32 %v1414, 0.0
      %v1447 = vmax.f32 %v1415, 0.0
      %v1448 = vmax.f32 %v1416, 0.0
      %v1449 = vmax.f32 %v1417, 0.0
      %v1450 = vmax.f32 %v1418, 0.0
      %v1451 = vmax.f32 %v1419, 0.0
      %v1452 = vmax.f32 %v1420, 0.0
      %v1453 = vmax.f32 %v1421, 0.0
      %v1454 = vmax.f32 %v1422, 0.0
      %v1455 = vmax.f32 %v1423, 0.0
      %v1456 = vmax.f32 %v1424, 0.0
      %v1457 = vmax.f32 %v1425, 0.0
      %v1458 = vmax.f32 %v1426, 0.0
      %v1459 = vmax.f32 %v1427, 0.0
      %v1460 = vmax.f32 %v1428, 0.0
      %v1461 = vmax.f32 %v1429, 0.0
      %v1462 = vmax.f32 %v1430, 0.0
      %v1463 = vmax.f32 %v1431, 0.0
      %v1464 = vmax.f32 %v1432, 0.0
      %v1465 = vmax.f32 %v1433, 0.0
      %v1466 = vmax.f32 %v1434, 0.0
      %v1467 = vmax.f32 %v1435, 0.0
      %v1468 = vmax.f32 %v1436, 0.0
      %v1469 = vmax.f32 %v1437, 0.0
      %v1470 = vmax.f32 %v1438, 0.0
      %v1471 = vmax.f32 %v1439, 0.0
      %v1472 = vmax.f32 %v1440, 0.0
      %v1473 = vmax.f32 %v1441, 0.0
      %s1474 = scalar_lea.vmem %s4, 32
      %v1475 = vld [vmem:[%s1474] sm:$0xff]
      %v1476 = vld [vmem:[%s1474 + $0x8] sm:$0xff]
      %v1477 = vld [vmem:[%s1474 + $0x10] sm:$0xff]
      %v1478 = vld [vmem:[%s1474 + $0x18] sm:$0xff]
      %v1480 = vsel %vm1040, %v1442, 0
      %v1483 = vsel %vm1040, %v1443, 0
      %v1486 = vsel %vm1040, %v1444, 0
      %v1489 = vsel %vm1040, %v1445, 0
      %v1492 = vsel %vm1040, %v1446, 0
      %v1495 = vsel %vm1040, %v1447, 0
      %v1498 = vsel %vm1040, %v1448, 0
      %v1501 = vsel %vm1040, %v1449, 0
      %v1504 = vsel %vm1040, %v1450, 0
      %v1507 = vsel %vm1040, %v1451, 0
      %v1510 = vsel %vm1040, %v1452, 0
      %v1513 = vsel %vm1040, %v1453, 0
      %v1516 = vsel %vm1040, %v1454, 0
      %v1519 = vsel %vm1040, %v1455, 0
      %v1522 = vsel %vm1040, %v1456, 0
      %v1525 = vsel %vm1040, %v1457, 0
      %v1528 = vsel %vm1040, %v1458, 0
      %v1531 = vsel %vm1040, %v1459, 0
      %v1534 = vsel %vm1040, %v1460, 0
      %v1537 = vsel %vm1040, %v1461, 0
      %v1540 = vsel %vm1040, %v1462, 0
      %v1543 = vsel %vm1040, %v1463, 0
      %v1546 = vsel %vm1040, %v1464, 0
      %v1549 = vsel %vm1040, %v1465, 0
      %v1552 = vsel %vm1040, %v1466, 0
      %v1555 = vsel %vm1040, %v1467, 0
      %v1558 = vsel %vm1040, %v1468, 0
      %v1561 = vsel %vm1040, %v1469, 0
      %v1564 = vsel %vm1040, %v1470, 0
      %v1567 = vsel %vm1040, %v1471, 0
      %v1570 = vsel %vm1040, %v1472, 0
      %v1573 = vsel %vm1040, %v1473, 0
      %1575 = vmatprep.subr.mxu0 0.0
      %1576 = vmatpush1.msra.mxu0 %v1475
      %1577 = vmatprep.subr.mxu0 0.0
      %1578 = vmatpush1.msra.mxu0 %v1476
      %1579 = vmatprep.subr.mxu0 0.0
      %1580 = vmatpush1.msra.mxu0 %v1477
      %1581 = vmatprep.subr.mxu0 0.0
      %1582 = vmatpush1.msra.mxu0 %v1478
      %1583 = vmatprep.subr.mxu0 0.0
      %1584 = vmatpush1.msra.mxu0 0.0
      %1585 = vmatprep.subr.mxu0 0.0
      %1586 = vmatpush1.msra.mxu0 0.0
      %1587 = vmatprep.subr.mxu0 0.0
      %1588 = vmatpush1.msra.mxu0 0.0
      %1589 = vmatprep.subr.mxu0 0.0
      %1590 = vmatpush1.msra.mxu0 0.0
      %1591 = vmatprep.subr.mxu0 0.0
      %1592 = vmatpush1.msra.mxu0 0.0
      %1593 = vmatprep.subr.mxu0 0.0
      %1594 = vmatpush1.msra.mxu0 0.0
      %1595 = vmatprep.subr.mxu0 0.0
      %1596 = vmatpush1.msra.mxu0 0.0
      %1597 = vmatprep.subr.mxu0 0.0
      %1598 = vmatpush1.msra.mxu0 0.0
      %1599 = vmatprep.subr.mxu0 0.0
      %1600 = vmatpush1.msra.mxu0 0.0
      %1601 = vmatprep.subr.mxu0 0.0
      %1602 = vmatpush1.msra.mxu0 0.0
      %1603 = vmatprep.subr.mxu0 0.0
      %1604 = vmatpush1.msra.mxu0 0.0
      %1605 = vmatprep.subr.mxu0 0.0
      %1606 = vmatpush1.msra.mxu0 0.0
      %1607 = vmatprep.subr.mxu0 0.0
      %1608 = vmatpush1.msra.mxu0 0.0
      %1609 = vmatprep.subr.mxu0 0.0
      %1610 = vmatpush1.msra.mxu0 0.0
      %1611 = vmatprep.subr.mxu0 0.0
      %1612 = vmatpush1.msra.mxu0 0.0
      %1613 = vmatprep.subr.mxu0 0.0
      %1614 = vmatpush1.msra.mxu0 0.0
      %1615 = vmatprep.subr.mxu0 0.0
      %1616 = vmatpush1.msra.mxu0 0.0
      %1617 = vmatprep.subr.mxu0 0.0
      %1618 = vmatpush1.msra.mxu0 0.0
      %1619 = vmatprep.subr.mxu0 0.0
      %1620 = vmatpush1.msra.mxu0 0.0
      %1621 = vmatprep.subr.mxu0 0.0
      %1622 = vmatpush1.msra.mxu0 0.0
      %1623 = vmatprep.subr.mxu0 0.0
      %1624 = vmatpush1.msra.mxu0 0.0
      %1625 = vmatprep.subr.mxu0 0.0
      %1626 = vmatpush1.msra.mxu0 0.0
      %1627 = vmatprep.subr.mxu0 0.0
      %1628 = vmatpush1.msra.mxu0 0.0
      %1629 = vmatprep.subr.mxu0 0.0
      %1630 = vmatpush1.msra.mxu0 0.0
      %1631 = vmatprep.subr.mxu0 0.0
      %1632 = vmatpush1.msra.mxu0 0.0
      %1633 = vmatprep.subr.mxu0 0.0
      %1634 = vmatpush1.msra.mxu0 0.0
      %1635 = vmatprep.subr.mxu0 0.0
      %1636 = vmatpush1.msra.mxu0 0.0
      %1637 = vmatprep.subr.mxu0 0.0
      %1638 = vmatpush1.msra.mxu0 0.0
      %1639 = vmatprep.mubr.f32.mxu0 0.0
      %1640 = vmatmul.mubr.f32.gmra.mrb[0].mxu0 %v1480
      %v1641 = vpop.f32.mrb[0].mxu0
      %v1642 = vadd.f32 %v1442, %v1641
      %v1643 = vpop.f32.mrb[0].mxu0
      %1644 = vmatprep.mubr.f32.mxu0 0.0
      %1645 = vmatmul.mubr.f32.gmra.mrb[0].mxu0 %v1483
      %v1646 = vpop.f32.mrb[0].mxu0
      %v1647 = vadd.f32 %v1443, %v1646
      %v1648 = vpop.f32.mrb[0].mxu0
      %1649 = vmatprep.mubr.f32.mxu0 0.0
      %1650 = vmatmul.mubr.f32.gmra.mrb[0].mxu0 %v1486
      %v1651 = vpop.f32.mrb[0].mxu0
      %v1652 = vadd.f32 %v1444, %v1651
      %v1653 = vpop.f32.mrb[0].mxu0
      %1654 = vmatprep.mubr.f32.mxu0 0.0
      %1655 = vmatmul.mubr.f32.gmra.mrb[0].mxu0 %v1489
      %v1656 = vpop.f32.mrb[0].mxu0
      %v1657 = vadd.f32 %v1445, %v1656
      %v1658 = vpop.f32.mrb[0].mxu0
      %1659 = vmatprep.mubr.f32.mxu0 0.0
      %1660 = vmatmul.mubr.f32.gmra.mrb[0].mxu0 %v1492
      %v1661 = vpop.f32.mrb[0].mxu0
      %v1662 = vadd.f32 %v1446, %v1661
      %v1663 = vpop.f32.mrb[0].mxu0
      %1664 = vmatprep.mubr.f32.mxu0 0.0
      %1665 = vmatmul.mubr.f32.gmra.mrb[0].mxu0 %v1495
      %v1666 = vpop.f32.mrb[0].mxu0
      %v1667 = vadd.f32 %v1447, %v1666
      %v1668 = vpop.f32.mrb[0].mxu0
      %1669 = vmatprep.mubr.f32.mxu0 0.0
      %1670 = vmatmul.mubr.f32.gmra.mrb[0].mxu0 %v1498
      %v1671 = vpop.f32.mrb[0].mxu0
      %v1672 = vadd.f32 %v1448, %v1671
      %v1673 = vpop.f32.mrb[0].mxu0
      %1674 = vmatprep.mubr.f32.mxu0 0.0
      %1675 = vmatmul.mubr.f32.gmra.mrb[0].mxu0 %v1501
      %v1676 = vpop.f32.mrb[0].mxu0
      %v1677 = vadd.f32 %v1449, %v1676
      %v1678 = vpop.f32.mrb[0].mxu0
      %1679 = vmatprep.mubr.f32.mxu0 0.0
      %1680 = vmatmul.mubr.f32.gmra.mrb[0].mxu0 %v1504
      %v1681 = vpop.f32.mrb[0].mxu0
      %v1682 = vadd.f32 %v1450, %v1681
      %v1683 = vpop.f32.mrb[0].mxu0
      %1684 = vmatprep.mubr.f32.mxu0 0.0
      %1685 = vmatmul.mubr.f32.gmra.mrb[0].mxu0 %v1507
      %v1686 = vpop.f32.mrb[0].mxu0
      %v1687 = vadd.f32 %v1451, %v1686
      %v1688 = vpop.f32.mrb[0].mxu0
      %1689 = vmatprep.mubr.f32.mxu0 0.0
      %1690 = vmatmul.mubr.f32.gmra.mrb[0].mxu0 %v1510
      %v1691 = vpop.f32.mrb[0].mxu0
      %v1692 = vadd.f32 %v1452, %v1691
      %v1693 = vpop.f32.mrb[0].mxu0
      %1694 = vmatprep.mubr.f32.mxu0 0.0
      %1695 = vmatmul.mubr.f32.gmra.mrb[0].mxu0 %v1513
      %v1696 = vpop.f32.mrb[0].mxu0
      %v1697 = vadd.f32 %v1453, %v1696
      %v1698 = vpop.f32.mrb[0].mxu0
      %1699 = vmatprep.mubr.f32.mxu0 0.0
      %1700 = vmatmul.mubr.f32.gmra.mrb[0].mxu0 %v1516
      %v1701 = vpop.f32.mrb[0].mxu0
      %v1702 = vadd.f32 %v1454, %v1701
      %v1703 = vpop.f32.mrb[0].mxu0
      %1704 = vmatprep.mubr.f32.mxu0 0.0
      %1705 = vmatmul.mubr.f32.gmra.mrb[0].mxu0 %v1519
      %v1706 = vpop.f32.mrb[0].mxu0
      %v1707 = vadd.f32 %v1455, %v1706
      %v1708 = vpop.f32.mrb[0].mxu0
      %1709 = vmatprep.mubr.f32.mxu0 0.0
      %1710 = vmatmul.mubr.f32.gmra.mrb[0].mxu0 %v1522
      %v1711 = vpop.f32.mrb[0].mxu0
      %v1712 = vadd.f32 %v1456, %v1711
      %v1713 = vpop.f32.mrb[0].mxu0
      %1714 = vmatprep.mubr.f32.mxu0 0.0
      %1715 = vmatmul.mubr.f32.gmra.mrb[0].mxu0 %v1525
      %v1716 = vpop.f32.mrb[0].mxu0
      %v1717 = vadd.f32 %v1457, %v1716
      %v1718 = vpop.f32.mrb[0].mxu0
      %1719 = vmatprep.mubr.f32.mxu0 0.0
      %1720 = vmatmul.mubr.f32.gmra.mrb[0].mxu0 %v1528
      %v1721 = vpop.f32.mrb[0].mxu0
      %v1722 = vadd.f32 %v1458, %v1721
      %v1723 = vpop.f32.mrb[0].mxu0
      %1724 = vmatprep.mubr.f32.mxu0 0.0
      %1725 = vmatmul.mubr.f32.gmra.mrb[0].mxu0 %v1531
      %v1726 = vpop.f32.mrb[0].mxu0
      %v1727 = vadd.f32 %v1459, %v1726
      %v1728 = vpop.f32.mrb[0].mxu0
      %1729 = vmatprep.mubr.f32.mxu0 0.0
      %1730 = vmatmul.mubr.f32.gmra.mrb[0].mxu0 %v1534
      %v1731 = vpop.f32.mrb[0].mxu0
      %v1732 = vadd.f32 %v1460, %v1731
      %v1733 = vpop.f32.mrb[0].mxu0
      %1734 = vmatprep.mubr.f32.mxu0 0.0
      %1735 = vmatmul.mubr.f32.gmra.mrb[0].mxu0 %v1537
      %v1736 = vpop.f32.mrb[0].mxu0
      %v1737 = vadd.f32 %v1461, %v1736
      %v1738 = vpop.f32.mrb[0].mxu0
      %1739 = vmatprep.mubr.f32.mxu0 0.0
      %1740 = vmatmul.mubr.f32.gmra.mrb[0].mxu0 %v1540
      %v1741 = vpop.f32.mrb[0].mxu0
      %v1742 = vadd.f32 %v1462, %v1741
      %v1743 = vpop.f32.mrb[0].mxu0
      %1744 = vmatprep.mubr.f32.mxu0 0.0
      %1745 = vmatmul.mubr.f32.gmra.mrb[0].mxu0 %v1543
      %v1746 = vpop.f32.mrb[0].mxu0
      %v1747 = vadd.f32 %v1463, %v1746
      %v1748 = vpop.f32.mrb[0].mxu0
      %1749 = vmatprep.mubr.f32.mxu0 0.0
      %1750 = vmatmul.mubr.f32.gmra.mrb[0].mxu0 %v1546
      %v1751 = vpop.f32.mrb[0].mxu0
      %v1752 = vadd.f32 %v1464, %v1751
      %v1753 = vpop.f32.mrb[0].mxu0
      %1754 = vmatprep.mubr.f32.mxu0 0.0
      %1755 = vmatmul.mubr.f32.gmra.mrb[0].mxu0 %v1549
      %v1756 = vpop.f32.mrb[0].mxu0
      %v1757 = vadd.f32 %v1465, %v1756
      %v1758 = vpop.f32.mrb[0].mxu0
      %1759 = vmatprep.mubr.f32.mxu0 0.0
      %1760 = vmatmul.mubr.f32.gmra.mrb[0].mxu0 %v1552
      %v1761 = vpop.f32.mrb[0].mxu0
      %v1762 = vadd.f32 %v1466, %v1761
      %v1763 = vpop.f32.mrb[0].mxu0
      %1764 = vmatprep.mubr.f32.mxu0 0.0
      %1765 = vmatmul.mubr.f32.gmra.mrb[0].mxu0 %v1555
      %v1766 = vpop.f32.mrb[0].mxu0
      %v1767 = vadd.f32 %v1467, %v1766
      %v1768 = vpop.f32.mrb[0].mxu0
      %1769 = vmatprep.mubr.f32.mxu0 0.0
      %1770 = vmatmul.mubr.f32.gmra.mrb[0].mxu0 %v1558
      %v1771 = vpop.f32.mrb[0].mxu0
      %v1772 = vadd.f32 %v1468, %v1771
      %v1773 = vpop.f32.mrb[0].mxu0
      %1774 = vmatprep.mubr.f32.mxu0 0.0
      %1775 = vmatmul.mubr.f32.gmra.mrb[0].mxu0 %v1561
      %v1776 = vpop.f32.mrb[0].mxu0
      %v1777 = vadd.f32 %v1469, %v1776
      %v1778 = vpop.f32.mrb[0].mxu0
      %1779 = vmatprep.mubr.f32.mxu0 0.0
      %1780 = vmatmul.mubr.f32.gmra.mrb[0].mxu0 %v1564
      %v1781 = vpop.f32.mrb[0].mxu0
      %v1782 = vadd.f32 %v1470, %v1781
      %v1783 = vpop.f32.mrb[0].mxu0
      %1784 = vmatprep.mubr.f32.mxu0 0.0
      %1785 = vmatmul.mubr.f32.gmra.mrb[0].mxu0 %v1567
      %v1786 = vpop.f32.mrb[0].mxu0
      %v1787 = vadd.f32 %v1471, %v1786
      %v1788 = vpop.f32.mrb[0].mxu0
      %1789 = vmatprep.mubr.f32.mxu0 0.0
      %1790 = vmatmul.mubr.f32.gmra.mrb[0].mxu0 %v1570
      %v1791 = vpop.f32.mrb[0].mxu0
      %v1792 = vadd.f32 %v1472, %v1791
      %v1793 = vpop.f32.mrb[0].mxu0
      %1794 = vmatprep.mubr.f32.mxu0 0.0
      %1795 = vmatmul.mubr.f32.gmra.mrb[0].mxu0 %v1573
      %v1796 = vpop.f32.mrb[0].mxu0
      %v1797 = vadd.f32 %v1473, %v1796
      %v1798 = vpop.f32.mrb[0].mxu0
      %1799 = vdwg.mxu0
      %s1800 = scalar_lea.vmem %s5, 2
      %v1801 = vld [vmem:[%s1800] sm:$0x1]
      %v1803 = vlaneseq
      %v1804 = vshrl.u32 %v1803, 7
      %v1805 = vsub.s32 0, %v1804
      %v1806 = vrot.slane %v1801, %v1805
      %v1808 = vmul.f32 %v1642, %v1806
      %v1809 = vmul.f32 %v1647, %v1806
      %v1810 = vmul.f32 %v1652, %v1806
      %v1811 = vmul.f32 %v1657, %v1806
      %v1812 = vmul.f32 %v1662, %v1806
      %v1813 = vmul.f32 %v1667, %v1806
      %v1814 = vmul.f32 %v1672, %v1806
      %v1815 = vmul.f32 %v1677, %v1806
      %v1816 = vmul.f32 %v1682, %v1806
      %v1817 = vmul.f32 %v1687, %v1806
      %v1818 = vmul.f32 %v1692, %v1806
      %v1819 = vmul.f32 %v1697, %v1806
      %v1820 = vmul.f32 %v1702, %v1806
      %v1821 = vmul.f32 %v1707, %v1806
      %v1822 = vmul.f32 %v1712, %v1806
      %v1823 = vmul.f32 %v1717, %v1806
      %v1824 = vmul.f32 %v1722, %v1806
      %v1825 = vmul.f32 %v1727, %v1806
      %v1826 = vmul.f32 %v1732, %v1806
      %v1827 = vmul.f32 %v1737, %v1806
      %v1828 = vmul.f32 %v1742, %v1806
      %v1829 = vmul.f32 %v1747, %v1806
      %v1830 = vmul.f32 %v1752, %v1806
      %v1831 = vmul.f32 %v1757, %v1806
      %v1832 = vmul.f32 %v1762, %v1806
      %v1833 = vmul.f32 %v1767, %v1806
      %v1834 = vmul.f32 %v1772, %v1806
      %v1835 = vmul.f32 %v1777, %v1806
      %v1836 = vmul.f32 %v1782, %v1806
      %v1837 = vmul.f32 %v1787, %v1806
      %v1838 = vmul.f32 %v1792, %v1806
      %v1839 = vmul.f32 %v1797, %v1806
      %s1840 = scalar_lea.vmem %s6, 2
      %v1841 = vld [vmem:[%s1840] sm:$0x1]
      %v1843 = vlaneseq
      %v1844 = vshrl.u32 %v1843, 7
      %v1845 = vsub.s32 0, %v1844
      %v1846 = vrot.slane %v1841, %v1845
      %v1848 = vadd.f32 %v1808, %v1846
      %v1849 = vadd.f32 %v1809, %v1846
      %v1850 = vadd.f32 %v1810, %v1846
      %v1851 = vadd.f32 %v1811, %v1846
      %v1852 = vadd.f32 %v1812, %v1846
      %v1853 = vadd.f32 %v1813, %v1846
      %v1854 = vadd.f32 %v1814, %v1846
      %v1855 = vadd.f32 %v1815, %v1846
      %v1856 = vadd.f32 %v1816, %v1846
      %v1857 = vadd.f32 %v1817, %v1846
      %v1858 = vadd.f32 %v1818, %v1846
      %v1859 = vadd.f32 %v1819, %v1846
      %v1860 = vadd.f32 %v1820, %v1846
      %v1861 = vadd.f32 %v1821, %v1846
      %v1862 = vadd.f32 %v1822, %v1846
      %v1863 = vadd.f32 %v1823, %v1846
      %v1864 = vadd.f32 %v1824, %v1846
      %v1865 = vadd.f32 %v1825, %v1846
      %v1866 = vadd.f32 %v1826, %v1846
      %v1867 = vadd.f32 %v1827, %v1846
      %v1868 = vadd.f32 %v1828, %v1846
      %v1869 = vadd.f32 %v1829, %v1846
      %v1870 = vadd.f32 %v1830, %v1846
      %v1871 = vadd.f32 %v1831, %v1846
      %v1872 = vadd.f32 %v1832, %v1846
      %v1873 = vadd.f32 %v1833, %v1846
      %v1874 = vadd.f32 %v1834, %v1846
      %v1875 = vadd.f32 %v1835, %v1846
      %v1876 = vadd.f32 %v1836, %v1846
      %v1877 = vadd.f32 %v1837, %v1846
      %v1878 = vadd.f32 %v1838, %v1846
      %v1879 = vadd.f32 %v1839, %v1846
      %v1880 = vmax.f32 %v1848, 0.0
      %v1881 = vmax.f32 %v1849, 0.0
      %v1882 = vmax.f32 %v1850, 0.0
      %v1883 = vmax.f32 %v1851, 0.0
      %v1884 = vmax.f32 %v1852, 0.0
      %v1885 = vmax.f32 %v1853, 0.0
      %v1886 = vmax.f32 %v1854, 0.0
      %v1887 = vmax.f32 %v1855, 0.0
      %v1888 = vmax.f32 %v1856, 0.0
      %v1889 = vmax.f32 %v1857, 0.0
      %v1890 = vmax.f32 %v1858, 0.0
      %v1891 = vmax.f32 %v1859, 0.0
      %v1892 = vmax.f32 %v1860, 0.0
      %v1893 = vmax.f32 %v1861, 0.0
      %v1894 = vmax.f32 %v1862, 0.0
      %v1895 = vmax.f32 %v1863, 0.0
      %v1896 = vmax.f32 %v1864, 0.0
      %v1897 = vmax.f32 %v1865, 0.0
      %v1898 = vmax.f32 %v1866, 0.0
      %v1899 = vmax.f32 %v1867, 0.0
      %v1900 = vmax.f32 %v1868, 0.0
      %v1901 = vmax.f32 %v1869, 0.0
      %v1902 = vmax.f32 %v1870, 0.0
      %v1903 = vmax.f32 %v1871, 0.0
      %v1904 = vmax.f32 %v1872, 0.0
      %v1905 = vmax.f32 %v1873, 0.0
      %v1906 = vmax.f32 %v1874, 0.0
      %v1907 = vmax.f32 %v1875, 0.0
      %v1908 = vmax.f32 %v1876, 0.0
      %v1909 = vmax.f32 %v1877, 0.0
      %v1910 = vmax.f32 %v1878, 0.0
      %v1911 = vmax.f32 %v1879, 0.0
      %v1912 = vld [vmem:[%s7] sm:$0xff]
      %v1913 = vld [vmem:[%s7 + $0x8] sm:$0xff]
      %v1914 = vld [vmem:[%s7 + $0x10] sm:$0xff]
      %v1915 = vld [vmem:[%s7 + $0x18] sm:$0xff]
      %v1916 = vld [vmem:[%s8] sm:$0x1]
      %v1918 = vlaneseq
      %v1919 = vshrl.u32 %v1918, 7
      %v1920 = vsub.s32 0, %v1919
      %v1921 = vrot.slane %v1916, %v1920
      %v1924 = vsel %vm1040, %v1880, 0
      %v1927 = vsel %vm1040, %v1881, 0
      %v1930 = vsel %vm1040, %v1882, 0
      %v1933 = vsel %vm1040, %v1883, 0
      %v1936 = vsel %vm1040, %v1884, 0
      %v1939 = vsel %vm1040, %v1885, 0
      %v1942 = vsel %vm1040, %v1886, 0
      %v1945 = vsel %vm1040, %v1887, 0
      %v1948 = vsel %vm1040, %v1888, 0
      %v1951 = vsel %vm1040, %v1889, 0
      %v1954 = vsel %vm1040, %v1890, 0
      %v1957 = vsel %vm1040, %v1891, 0
      %v1960 = vsel %vm1040, %v1892, 0
      %v1963 = vsel %vm1040, %v1893, 0
      %v1966 = vsel %vm1040, %v1894, 0
      %v1969 = vsel %vm1040, %v1895, 0
      %v1972 = vsel %vm1040, %v1896, 0
      %v1975 = vsel %vm1040, %v1897, 0
      %v1978 = vsel %vm1040, %v1898, 0
      %v1981 = vsel %vm1040, %v1899, 0
      %v1984 = vsel %vm1040, %v1900, 0
      %v1987 = vsel %vm1040, %v1901, 0
      %v1990 = vsel %vm1040, %v1902, 0
      %v1993 = vsel %vm1040, %v1903, 0
      %v1996 = vsel %vm1040, %v1904, 0
      %v1999 = vsel %vm1040, %v1905, 0
      %v2002 = vsel %vm1040, %v1906, 0
      %v2005 = vsel %vm1040, %v1907, 0
      %v2008 = vsel %vm1040, %v1908, 0
      %v2011 = vsel %vm1040, %v1909, 0
      %v2014 = vsel %vm1040, %v1910, 0
      %v2017 = vsel %vm1040, %v1911, 0
      %2019 = vmatprep.subr.mxu0 0.0
      %2020 = vmatpush1.msra.mxu0 %v1912
      %2021 = vmatprep.subr.mxu0 0.0
      %2022 = vmatpush1.msra.mxu0 %v1913
      %2023 = vmatprep.subr.mxu0 0.0
      %2024 = vmatpush1.msra.mxu0 %v1914
      %2025 = vmatprep.subr.mxu0 0.0
      %2026 = vmatpush1.msra.mxu0 %v1915
      %2027 = vmatprep.subr.mxu0 0.0
      %2028 = vmatpush1.msra.mxu0 0.0
      %2029 = vmatprep.subr.mxu0 0.0
      %2030 = vmatpush1.msra.mxu0 0.0
      %2031 = vmatprep.subr.mxu0 0.0
      %2032 = vmatpush1.msra.mxu0 0.0
      %2033 = vmatprep.subr.mxu0 0.0
      %2034 = vmatpush1.msra.mxu0 0.0
      %2035 = vmatprep.subr.mxu0 0.0
      %2036 = vmatpush1.msra.mxu0 0.0
      %2037 = vmatprep.subr.mxu0 0.0
      %2038 = vmatpush1.msra.mxu0 0.0
      %2039 = vmatprep.subr.mxu0 0.0
      %2040 = vmatpush1.msra.mxu0 0.0
      %2041 = vmatprep.subr.mxu0 0.0
      %2042 = vmatpush1.msra.mxu0 0.0
      %2043 = vmatprep.subr.mxu0 0.0
      %2044 = vmatpush1.msra.mxu0 0.0
      %2045 = vmatprep.subr.mxu0 0.0
      %2046 = vmatpush1.msra.mxu0 0.0
      %2047 = vmatprep.subr.mxu0 0.0
      %2048 = vmatpush1.msra.mxu0 0.0
      %2049 = vmatprep.subr.mxu0 0.0
      %2050 = vmatpush1.msra.mxu0 0.0
      %2051 = vmatprep.subr.mxu0 0.0
      %2052 = vmatpush1.msra.mxu0 0.0
      %2053 = vmatprep.subr.mxu0 0.0
      %2054 = vmatpush1.msra.mxu0 0.0
      %2055 = vmatprep.subr.mxu0 0.0
      %2056 = vmatpush1.msra.mxu0 0.0
      %2057 = vmatprep.subr.mxu0 0.0
      %2058 = vmatpush1.msra.mxu0 0.0
      %2059 = vmatprep.subr.mxu0 0.0
      %2060 = vmatpush1.msra.mxu0 0.0
      %2061 = vmatprep.subr.mxu0 0.0
      %2062 = vmatpush1.msra.mxu0 0.0
      %2063 = vmatprep.subr.mxu0 0.0
      %2064 = vmatpush1.msra.mxu0 0.0
      %2065 = vmatprep.subr.mxu0 0.0
      %2066 = vmatpush1.msra.mxu0 0.0
      %2067 = vmatprep.subr.mxu0 0.0
      %2068 = vmatpush1.msra.mxu0 0.0
      %2069 = vmatprep.subr.mxu0 0.0
      %2070 = vmatpush1.msra.mxu0 0.0
      %2071 = vmatprep.subr.mxu0 0.0
      %2072 = vmatpush1.msra.mxu0 0.0
      %2073 = vmatprep.subr.mxu0 0.0
      %2074 = vmatpush1.msra.mxu0 0.0
      %2075 = vmatprep.subr.mxu0 0.0
      %2076 = vmatpush1.msra.mxu0 0.0
      %2077 = vmatprep.subr.mxu0 0.0
      %2078 = vmatpush1.msra.mxu0 0.0
      %2079 = vmatprep.subr.mxu0 0.0
      %2080 = vmatpush1.msra.mxu0 0.0
      %2081 = vmatprep.subr.mxu0 0.0
      %2082 = vmatpush1.msra.mxu0 0.0
      %2083 = vmatprep.mubr.f32.mxu0 0.0
      %2084 = vmatmul.mubr.f32.gmra.mrb[0].mxu0 %v1924
      %v2085 = vpop.f32.mrb[0].mxu0
      %v2086 = vadd.f32 %v1921, %v2085
      %v2087 = vpop.f32.mrb[0].mxu0
      %2088 = vmatprep.mubr.f32.mxu0 0.0
      %2089 = vmatmul.mubr.f32.gmra.mrb[0].mxu0 %v1927
      %v2090 = vpop.f32.mrb[0].mxu0
      %v2091 = vadd.f32 %v1921, %v2090
      %v2092 = vpop.f32.mrb[0].mxu0
      %2093 = vmatprep.mubr.f32.mxu0 0.0
      %2094 = vmatmul.mubr.f32.gmra.mrb[0].mxu0 %v1930
      %v2095 = vpop.f32.mrb[0].mxu0
      %v2096 = vadd.f32 %v1921, %v2095
      %v2097 = vpop.f32.mrb[0].mxu0
      %2098 = vmatprep.mubr.f32.mxu0 0.0
      %2099 = vmatmul.mubr.f32.gmra.mrb[0].mxu0 %v1933
      %v2100 = vpop.f32.mrb[0].mxu0
      %v2101 = vadd.f32 %v1921, %v2100
      %v2102 = vpop.f32.mrb[0].mxu0
      %2103 = vmatprep.mubr.f32.mxu0 0.0
      %2104 = vmatmul.mubr.f32.gmra.mrb[0].mxu0 %v1936
      %v2105 = vpop.f32.mrb[0].mxu0
      %v2106 = vadd.f32 %v1921, %v2105
      %v2107 = vpop.f32.mrb[0].mxu0
      %2108 = vmatprep.mubr.f32.mxu0 0.0
      %2109 = vmatmul.mubr.f32.gmra.mrb[0].mxu0 %v1939
      %v2110 = vpop.f32.mrb[0].mxu0
      %v2111 = vadd.f32 %v1921, %v2110
      %v2112 = vpop.f32.mrb[0].mxu0
      %2113 = vmatprep.mubr.f32.mxu0 0.0
      %2114 = vmatmul.mubr.f32.gmra.mrb[0].mxu0 %v1942
      %v2115 = vpop.f32.mrb[0].mxu0
      %v2116 = vadd.f32 %v1921, %v2115
      %v2117 = vpop.f32.mrb[0].mxu0
      %2118 = vmatprep.mubr.f32.mxu0 0.0
      %2119 = vmatmul.mubr.f32.gmra.mrb[0].mxu0 %v1945
      %v2120 = vpop.f32.mrb[0].mxu0
      %v2121 = vadd.f32 %v1921, %v2120
      %v2122 = vpop.f32.mrb[0].mxu0
      %2123 = vmatprep.mubr.f32.mxu0 0.0
      %2124 = vmatmul.mubr.f32.gmra.mrb[0].mxu0 %v1948
      %v2125 = vpop.f32.mrb[0].mxu0
      %v2126 = vadd.f32 %v1921, %v2125
      %v2127 = vpop.f32.mrb[0].mxu0
      %2128 = vmatprep.mubr.f32.mxu0 0.0
      %2129 = vmatmul.mubr.f32.gmra.mrb[0].mxu0 %v1951
      %v2130 = vpop.f32.mrb[0].mxu0
      %v2131 = vadd.f32 %v1921, %v2130
      %v2132 = vpop.f32.mrb[0].mxu0
      %2133 = vmatprep.mubr.f32.mxu0 0.0
      %2134 = vmatmul.mubr.f32.gmra.mrb[0].mxu0 %v1954
      %v2135 = vpop.f32.mrb[0].mxu0
      %v2136 = vadd.f32 %v1921, %v2135
      %v2137 = vpop.f32.mrb[0].mxu0
      %2138 = vmatprep.mubr.f32.mxu0 0.0
      %2139 = vmatmul.mubr.f32.gmra.mrb[0].mxu0 %v1957
      %v2140 = vpop.f32.mrb[0].mxu0
      %v2141 = vadd.f32 %v1921, %v2140
      %v2142 = vpop.f32.mrb[0].mxu0
      %2143 = vmatprep.mubr.f32.mxu0 0.0
      %2144 = vmatmul.mubr.f32.gmra.mrb[0].mxu0 %v1960
      %v2145 = vpop.f32.mrb[0].mxu0
      %v2146 = vadd.f32 %v1921, %v2145
      %v2147 = vpop.f32.mrb[0].mxu0
      %2148 = vmatprep.mubr.f32.mxu0 0.0
      %2149 = vmatmul.mubr.f32.gmra.mrb[0].mxu0 %v1963
      %v2150 = vpop.f32.mrb[0].mxu0
      %v2151 = vadd.f32 %v1921, %v2150
      %v2152 = vpop.f32.mrb[0].mxu0
      %2153 = vmatprep.mubr.f32.mxu0 0.0
      %2154 = vmatmul.mubr.f32.gmra.mrb[0].mxu0 %v1966
      %v2155 = vpop.f32.mrb[0].mxu0
      %v2156 = vadd.f32 %v1921, %v2155
      %v2157 = vpop.f32.mrb[0].mxu0
      %2158 = vmatprep.mubr.f32.mxu0 0.0
      %2159 = vmatmul.mubr.f32.gmra.mrb[0].mxu0 %v1969
      %v2160 = vpop.f32.mrb[0].mxu0
      %v2161 = vadd.f32 %v1921, %v2160
      %v2162 = vpop.f32.mrb[0].mxu0
      %2163 = vmatprep.mubr.f32.mxu0 0.0
      %2164 = vmatmul.mubr.f32.gmra.mrb[0].mxu0 %v1972
      %v2165 = vpop.f32.mrb[0].mxu0
      %v2166 = vadd.f32 %v1921, %v2165
      %v2167 = vpop.f32.mrb[0].mxu0
      %2168 = vmatprep.mubr.f32.mxu0 0.0
      %2169 = vmatmul.mubr.f32.gmra.mrb[0].mxu0 %v1975
      %v2170 = vpop.f32.mrb[0].mxu0
      %v2171 = vadd.f32 %v1921, %v2170
      %v2172 = vpop.f32.mrb[0].mxu0
      %2173 = vmatprep.mubr.f32.mxu0 0.0
      %2174 = vmatmul.mubr.f32.gmra.mrb[0].mxu0 %v1978
      %v2175 = vpop.f32.mrb[0].mxu0
      %v2176 = vadd.f32 %v1921, %v2175
      %v2177 = vpop.f32.mrb[0].mxu0
      %2178 = vmatprep.mubr.f32.mxu0 0.0
      %2179 = vmatmul.mubr.f32.gmra.mrb[0].mxu0 %v1981
      %v2180 = vpop.f32.mrb[0].mxu0
      %v2181 = vadd.f32 %v1921, %v2180
      %v2182 = vpop.f32.mrb[0].mxu0
      %2183 = vmatprep.mubr.f32.mxu0 0.0
      %2184 = vmatmul.mubr.f32.gmra.mrb[0].mxu0 %v1984
      %v2185 = vpop.f32.mrb[0].mxu0
      %v2186 = vadd.f32 %v1921, %v2185
      %v2187 = vpop.f32.mrb[0].mxu0
      %2188 = vmatprep.mubr.f32.mxu0 0.0
      %2189 = vmatmul.mubr.f32.gmra.mrb[0].mxu0 %v1987
      %v2190 = vpop.f32.mrb[0].mxu0
      %v2191 = vadd.f32 %v1921, %v2190
      %v2192 = vpop.f32.mrb[0].mxu0
      %2193 = vmatprep.mubr.f32.mxu0 0.0
      %2194 = vmatmul.mubr.f32.gmra.mrb[0].mxu0 %v1990
      %v2195 = vpop.f32.mrb[0].mxu0
      %v2196 = vadd.f32 %v1921, %v2195
      %v2197 = vpop.f32.mrb[0].mxu0
      %2198 = vmatprep.mubr.f32.mxu0 0.0
      %2199 = vmatmul.mubr.f32.gmra.mrb[0].mxu0 %v1993
      %v2200 = vpop.f32.mrb[0].mxu0
      %v2201 = vadd.f32 %v1921, %v2200
      %v2202 = vpop.f32.mrb[0].mxu0
      %2203 = vmatprep.mubr.f32.mxu0 0.0
      %2204 = vmatmul.mubr.f32.gmra.mrb[0].mxu0 %v1996
      %v2205 = vpop.f32.mrb[0].mxu0
      %v2206 = vadd.f32 %v1921, %v2205
      %v2207 = vpop.f32.mrb[0].mxu0
      %2208 = vmatprep.mubr.f32.mxu0 0.0
      %2209 = vmatmul.mubr.f32.gmra.mrb[0].mxu0 %v1999
      %v2210 = vpop.f32.mrb[0].mxu0
      %v2211 = vadd.f32 %v1921, %v2210
      %v2212 = vpop.f32.mrb[0].mxu0
      %2213 = vmatprep.mubr.f32.mxu0 0.0
      %2214 = vmatmul.mubr.f32.gmra.mrb[0].mxu0 %v2002
      %v2215 = vpop.f32.mrb[0].mxu0
      %v2216 = vadd.f32 %v1921, %v2215
      %v2217 = vpop.f32.mrb[0].mxu0
      %2218 = vmatprep.mubr.f32.mxu0 0.0
      %2219 = vmatmul.mubr.f32.gmra.mrb[0].mxu0 %v2005
      %v2220 = vpop.f32.mrb[0].mxu0
      %v2221 = vadd.f32 %v1921, %v2220
      %v2222 = vpop.f32.mrb[0].mxu0
      %2223 = vmatprep.mubr.f32.mxu0 0.0
      %2224 = vmatmul.mubr.f32.gmra.mrb[0].mxu0 %v2008
      %v2225 = vpop.f32.mrb[0].mxu0
      %v2226 = vadd.f32 %v1921, %v2225
      %v2227 = vpop.f32.mrb[0].mxu0
      %2228 = vmatprep.mubr.f32.mxu0 0.0
      %2229 = vmatmul.mubr.f32.gmra.mrb[0].mxu0 %v2011
      %v2230 = vpop.f32.mrb[0].mxu0
      %v2231 = vadd.f32 %v1921, %v2230
      %v2232 = vpop.f32.mrb[0].mxu0
      %2233 = vmatprep.mubr.f32.mxu0 0.0
      %2234 = vmatmul.mubr.f32.gmra.mrb[0].mxu0 %v2014
      %v2235 = vpop.f32.mrb[0].mxu0
      %v2236 = vadd.f32 %v1921, %v2235
      %v2237 = vpop.f32.mrb[0].mxu0
      %2238 = vmatprep.mubr.f32.mxu0 0.0
      %2239 = vmatmul.mubr.f32.gmra.mrb[0].mxu0 %v2017
      %v2240 = vpop.f32.mrb[0].mxu0
      %v2241 = vadd.f32 %v1921, %v2240
      %v2242 = vpop.f32.mrb[0].mxu0
      %2243 = vdwg.mxu0
      %2244 = vst [vmem:[%s334] sm:$0xff] %v2086
      %2245 = vst [vmem:[%s334 + $0x8] sm:$0xff] %v2091
      %2246 = vst [vmem:[%s334 + $0x10] sm:$0xff] %v2096
      %2247 = vst [vmem:[%s334 + $0x18] sm:$0xff] %v2101
      %2248 = vst [vmem:[%s334 + $0x20] sm:$0xff] %v2106
      %2249 = vst [vmem:[%s334 + $0x28] sm:$0xff] %v2111
      %2250 = vst [vmem:[%s334 + $0x30] sm:$0xff] %v2116
      %2251 = vst [vmem:[%s334 + $0x38] sm:$0xff] %v2121
      %2252 = vst [vmem:[%s334 + $0x40] sm:$0xff] %v2126
      %2253 = vst [vmem:[%s334 + $0x48] sm:$0xff] %v2131
      %2254 = vst [vmem:[%s334 + $0x50] sm:$0xff] %v2136
      %2255 = vst [vmem:[%s334 + $0x58] sm:$0xff] %v2141
      %2256 = vst [vmem:[%s334 + $0x60] sm:$0xff] %v2146
      %2257 = vst [vmem:[%s334 + $0x68] sm:$0xff] %v2151
      %2258 = vst [vmem:[%s334 + $0x70] sm:$0xff] %v2156
      %2259 = vst [vmem:[%s334 + $0x78] sm:$0xff] %v2161
      %2260 = vst [vmem:[%s334 + $0x80] sm:$0xff] %v2166
      %2261 = vst [vmem:[%s334 + $0x88] sm:$0xff] %v2171
      %2262 = vst [vmem:[%s334 + $0x90] sm:$0xff] %v2176
      %2263 = vst [vmem:[%s334 + $0x98] sm:$0xff] %v2181
      %2264 = vst [vmem:[%s334 + $0xa0] sm:$0xff] %v2186
      %2265 = vst [vmem:[%s334 + $0xa8] sm:$0xff] %v2191
      %2266 = vst [vmem:[%s334 + $0xb0] sm:$0xff] %v2196
      %2267 = vst [vmem:[%s334 + $0xb8] sm:$0xff] %v2201
      %2268 = vst [vmem:[%s334 + $0xc0] sm:$0xff] %v2206
      %2269 = vst [vmem:[%s334 + $0xc8] sm:$0xff] %v2211
      %2270 = vst [vmem:[%s334 + $0xd0] sm:$0xff] %v2216
      %2271 = vst [vmem:[%s334 + $0xd8] sm:$0xff] %v2221
      %2272 = vst [vmem:[%s334 + $0xe0] sm:$0xff] %v2226
      %2273 = vst [vmem:[%s334 + $0xe8] sm:$0xff] %v2231
      %2274 = vst [vmem:[%s334 + $0xf0] sm:$0xff] %v2236
      %2275 = vst [vmem:[%s334 + $0xf8] sm:$0xff] %v2241
      %s2276 = smul.u32 32, %s20
      %p2277 = scmp.lt.s32.totalorder %s2276, 63
      %s2278 = scalar_select %p2277, %s2276, 63
      %s2279 = smul.addr %s2278, 8
      %s2280 = scalar_lea.vmem %s9, %s2279
      // Predicated region
      $region57: #{improved_mlp_pallas.1} parent=55 // pred_check
        %p2281 = pneg %p232
      $region58: #{improved_mlp_pallas.1} parent=55 // pred_check_branch
        %2283 = sbr.rel (%p2281) target = $region60
      $region59: #{improved_mlp_pallas.1} parent=55 // pred_region
        %s2284 = smul.u32 32, %s20
      $region60: #{improved_mlp_pallas.1} parent=55 // pred_fallthru
        _
    $region56: #{improved_mlp_pallas.1} parent=5 // pred_fallthru
      _
    %p2285 = scmp.le.s32.totalorder 2, %s15
    // Predicated region
    $region61: #{improved_mlp_pallas.1} parent=5 // pred_check
      %p2286 = pneg %p2285
    $region62: #{improved_mlp_pallas.1} parent=5 // pred_check_branch
      %2288 = sbr.rel (%p2286) target = $region64
    $region63: #{improved_mlp_pallas.1} parent=5 // pred_region
      %s2289 = ssub.s32 %s15, 2
      // Predicated region
      $region65: #{improved_mlp_pallas.1} parent=63 // pred_check
        %p2290 = pneg %p238
      $region66: #{improved_mlp_pallas.1} parent=63 // pred_check_branch
        %2292 = sbr.rel (%p2290) target = $region68
      $region67: #{improved_mlp_pallas.1} parent=63 // pred_region
        %s2293 = smul.u32 32, %s21
        %p2294 = scmp.lt.s32.totalorder %s2293, 63
        %s2295 = scalar_select %p2294, %s2293, 63
        %s2296 = smul.addr %s2295, 8
        %s2297 = scalar_lea.vmem %s9, %s2296
      $region68: #{improved_mlp_pallas.1} parent=63 // pred_fallthru
        _
    $region64: #{improved_mlp_pallas.1} parent=5 // pred_fallthru
      _
  $region6: #{improved_mlp_pallas.1} parent=0 // loop_footer
    %s19 = sadd.s32 1, %s15
  $region7: #{improved_mlp_pallas.1} parent=0 // loop_footer_branch
    %14 = sbr.rel target = $region3
  $region8: #{improved_mlp_pallas.1} parent=0 // loop_exit
    _

</llo_original>
